<compile_context>
chip_gen: v5e
topology: v5e:2x2
jax: 0.10.0
libtpu: 0.0.40
codegen_flags: <defaults>
</compile_context>

<pallas_src>
import numpy as np

import jax
import jax.numpy as jnp
from jax import lax
from jax.experimental import pallas as pl
from jax.experimental.pallas import tpu as pltpu


# --------------------------------------------------------------------------- #
# Host-side (trace-time) weight preprocessing
# --------------------------------------------------------------------------- #

def _conv_operators(w, hin, win, stride):
    """Turn a PyTorch-layout 3x3 conv weight (Cout, Cin, 3, 3), padding=1,
    stride `stride`, acting on an input of spatial size (hin, win), into the
    matmul operators used in-kernel:

        out(Hout, Wout*Cout) = sum_dy  R[dy] @ A @ N[dy]

    where A is the input activation laid out as (Hin, Win*Cin) (channel fastest).
      R: (3, Hout, Hin)            0/1 height-tap + stride + zero-pad selection
      N: (3, Win*Cin, Wout*Cout)   width-tap selection fused with channel mixing
    """
    cout, cin = int(w.shape[0]), int(w.shape[1])
    hout = (hin - 1) // stride + 1        # kernel 3, padding 1
    wout = (win - 1) // stride + 1

    sel = np.zeros((3, win, wout), np.float32)    # sel[dx, w_in, j_out]
    rsel = np.zeros((3, hout, hin), np.float32)   # rsel[dy, i_out, h_in]
    for d in range(3):
        for j in range(wout):
            c = stride * j + d - 1
            if 0 <= c < win:
                sel[d, c, j] = 1.0
        for i in range(hout):
            r = stride * i + d - 1
            if 0 <= r < hin:
                rsel[d, i, r] = 1.0

    # N[dy, w_in*Cin + ci, j_out*Cout + co] = sum_dx sel[dx, w_in, j_out] * w[co, ci, dy, dx]
    n = jnp.einsum("xwj,oidx->dwijo", jnp.asarray(sel), w,
                   precision=lax.Precision.HIGHEST)
    n = n.reshape(3, win * cin, wout * cout)
    return n, jnp.asarray(rsel)


def _fc_operator(w_fc, hout, wout, cout):
    """PyTorch fc weight (10, Cout*Hout*Wout) in NCHW-flatten order ->
    (Hout, Wout*Cout, 10) so the FC consumes the (H, W*C) conv3 activation
    layout directly (no runtime transpose)."""
    nout = w_fc.shape[0]
    w4 = w_fc.reshape(nout, cout, hout, wout)            # (o, c, i, j)
    return jnp.transpose(w4, (2, 3, 1, 0)).reshape(hout, wout * cout, nout)


# --------------------------------------------------------------------------- #
# Fused Pallas kernel
# --------------------------------------------------------------------------- #

def _conv_block(a_in, n_ref, r_ref, relu):
    """One conv layer:  sum_dy (R[dy] @ A) @ N[dy], optional fused ReLU."""
    hout = r_ref.shape[1]
    ncol = n_ref.shape[2]
    acc = jnp.zeros((hout, ncol), jnp.float32)
    for dy in range(3):
        rows = jnp.dot(r_ref[dy], a_in, preferred_element_type=jnp.float32)
        acc = acc + jnp.dot(rows, n_ref[dy], preferred_element_type=jnp.float32)
    return jnp.maximum(acc, 0.0) if relu else acc


def _fused_forward_kernel(x_ref, n1_ref, r1_ref, n2_ref, r2_ref,
                          n3_ref, r3_ref, wfc_ref, bfc_ref, o_ref):
    a0 = x_ref[0]                                      # (28, 28)   H x (W*Cin)
    a1 = _conv_block(a0, n1_ref, r1_ref, relu=False)   # (28, 224)  conv1
    a2 = _conv_block(a1, n2_ref, r2_ref, relu=True)    # (14, 224)  conv2 + relu
    a3 = _conv_block(a2, n3_ref, r3_ref, relu=True)    # (7, 224)   conv3 + relu

    # fc1 (+ bias): accumulate per activation row against the pre-permuted weight.
    acc = bfc_ref[...]                                 # (1, 10)
    for i in range(wfc_ref.shape[0]):                  # 7 rows
        acc = acc + jnp.dot(a3[i:i + 1, :], wfc_ref[i],
                            preferred_element_type=jnp.float32)
    o_ref[...] = acc[None]                             # (1, 1, 10)


def _full_spec(arr):
    zeros = (0,) * arr.ndim
    return pl.BlockSpec(arr.shape, lambda b: zeros)    # resident across grid


def simple_model_forward(x_nchw, params):
    B, _, H, W = x_nchw.shape
    x_hw = x_nchw[:, 0, :, :]                          # (B, 28, 28), Cin = 1

    # Conv output spatial sizes (k=3, pad=1).
    h1, w1 = (H - 1) // 1 + 1, (W - 1) // 1 + 1        # 28, 28
    h2, w2 = (h1 - 1) // 2 + 1, (w1 - 1) // 2 + 1      # 14, 14
    h3, w3 = (h2 - 1) // 2 + 1, (w2 - 1) // 2 + 1      # 7, 7

    n1, r1 = _conv_operators(params["conv1"], H, W, 1)
    n2, r2 = _conv_operators(params["conv2"], h1, w1, 2)
    n3, r3 = _conv_operators(params["conv3"], h2, w2, 2)
    wfc = _fc_operator(params["fc1_w"], h3, w3, params["conv3"].shape[0])
    bfc = params["fc1_b"].reshape(1, -1)

    nout = bfc.shape[1]
    out = pl.pallas_call(
        _fused_forward_kernel,
        out_shape=jax.ShapeDtypeStruct((B, 1, nout), jnp.float32),
        grid=(B,),
        in_specs=[
            pl.BlockSpec((1, H, W), lambda b: (b, 0, 0)),
            _full_spec(n1), _full_spec(r1),
            _full_spec(n2), _full_spec(r2),
            _full_spec(n3), _full_spec(r3),
            _full_spec(wfc), _full_spec(bfc),
        ],
        out_specs=pl.BlockSpec((1, 1, nout), lambda b: (b, 0, 0)),
        compiler_params=pltpu.CompilerParams(
            dimension_semantics=("parallel",)),
    )(x_hw, n1, r1, n2, r2, n3, r3, wfc, bfc)
    return out.reshape(B, nout)


# --------------------------------------------------------------------------- #
# Pure-JAX reference (mirrors the PyTorch module) for a sanity check
# --------------------------------------------------------------------------- #

def _reference_forward(x, params):
    dn = ("NCHW", "OIHW", "NCHW")

    def conv(v, w, s):
        return lax.conv_general_dilated(v, w, (s, s), ((1, 1), (1, 1)),
                                        dimension_numbers=dn,
                                        precision=lax.Precision.HIGHEST)

    v = conv(x, params["conv1"], 1)
    v = jax.nn.relu(conv(v, params["conv2"], 2))
    v = jax.nn.relu(conv(v, params["conv3"], 2))
    v = v.reshape(v.shape[0], -1)                       # NCHW flatten
    return jnp.dot(v, params["fc1_w"].T,
                   precision=lax.Precision.HIGHEST) + params["fc1_b"]


# --------------------------------------------------------------------------- #
# Main
# --------------------------------------------------------------------------- #

if __name__ == "__main__":
    key = jax.random.PRNGKey(0)
    kx, k1, k2, k3, k4, k5 = jax.random.split(key, 6)

    # Input spatial size 28x28 is implied by fc1 = Linear(32*7*7, 10).
    x = jax.random.normal(kx, (2, 1, 28, 28), dtype=jnp.float32)

    # PyTorch layouts: conv weights (Cout, Cin, 3, 3), bias-free (as in the
    # reference); fc1 weight (10, 1568) + bias (10,) (nn.Linear default).
    params = {
        "conv1": jax.random.normal(k1, (8, 1, 3, 3), jnp.float32) * 0.1,
        "conv2": jax.random.normal(k2, (16, 8, 3, 3), jnp.float32) * 0.1,
        "conv3": jax.random.normal(k3, (32, 16, 3, 3), jnp.float32) * 0.1,
        "fc1_w": jax.random.normal(k4, (10, 32 * 7 * 7), jnp.float32) * 0.05,
        "fc1_b": jax.random.normal(k5, (10,), jnp.float32) * 0.05,
    }

    out = jax.jit(simple_model_forward)(x, params)
    out = jax.block_until_ready(out)
    assert out.shape == (2, 10), out.shape
    assert out.dtype == jnp.float32

    ref = jax.block_until_ready(_reference_forward(x, params))
    max_err = float(jnp.max(jnp.abs(out - ref)))
    assert max_err < 5e-2, f"kernel/reference mismatch, max abs err = {max_err}"

    print("KERNEL_OK")
</pallas_src>

<mosaic_0001>
module attributes {stable_mosaic.version = 11 : i64} {
  func.func @_fused_forward_kernel(%arg0: i32, %arg1: memref<1x28x28xf32, #tpu.memory_space<vmem>>, %arg2: memref<3x28x224xf32, #tpu.memory_space<vmem>>, %arg3: memref<3x28x28xf32, #tpu.memory_space<vmem>>, %arg4: memref<3x224x224xf32, #tpu.memory_space<vmem>>, %arg5: memref<3x14x28xf32, #tpu.memory_space<vmem>>, %arg6: memref<3x224x224xf32, #tpu.memory_space<vmem>>, %arg7: memref<3x7x14xf32, #tpu.memory_space<vmem>>, %arg8: memref<7x224x10xf32, #tpu.memory_space<vmem>>, %arg9: memref<1x10xf32, #tpu.memory_space<vmem>>, %arg10: memref<1x1x10xf32, #tpu.memory_space<vmem>>) attributes {dimension_semantics = [#tpu.dimension_semantics<parallel>], iteration_bounds = array<i64: 2>, scalar_prefetch = 0 : i64, scratch_operands = 0 : i64, tpu.core_type = #tpu.core_type<tc>, window_params = [{transform_indices = @transform_0, window_bounds = array<i64: 1, 28, 28>}, {pipeline_mode = #tpu.pipeline_mode<synchronous>, transform_indices = @transform_1, window_bounds = array<i64: 3, 28, 224>}, {pipeline_mode = #tpu.pipeline_mode<synchronous>, transform_indices = @transform_2, window_bounds = array<i64: 3, 28, 28>}, {pipeline_mode = #tpu.pipeline_mode<synchronous>, transform_indices = @transform_3, window_bounds = array<i64: 3, 224, 224>}, {pipeline_mode = #tpu.pipeline_mode<synchronous>, transform_indices = @transform_4, window_bounds = array<i64: 3, 14, 28>}, {pipeline_mode = #tpu.pipeline_mode<synchronous>, transform_indices = @transform_5, window_bounds = array<i64: 3, 224, 224>}, {pipeline_mode = #tpu.pipeline_mode<synchronous>, transform_indices = @transform_6, window_bounds = array<i64: 3, 7, 14>}, {pipeline_mode = #tpu.pipeline_mode<synchronous>, transform_indices = @transform_7, window_bounds = array<i64: 7, 224, 10>}, {pipeline_mode = #tpu.pipeline_mode<synchronous>, transform_indices = @transform_8, window_bounds = array<i64: 1, 10>}, {transform_indices = @transform_9, window_bounds = array<i64: 1, 1, 10>}]} {
    %c0 = arith.constant 0 : index
    %c0_0 = arith.constant 0 : index
    %c0_1 = arith.constant 0 : index
    %0 = vector.load %arg1[%c0, %c0_0, %c0_1] : memref<1x28x28xf32, #tpu.memory_space<vmem>>, vector<1x28x28xf32>
    %1 = vector.shape_cast %0 : vector<1x28x28xf32> to vector<28x28xf32>
    %cst = arith.constant 0.000000e+00 : f32
    %2 = vector.broadcast %cst : f32 to vector<28x224xf32>
    %c0_2 = arith.constant 0 : index
    %c0_3 = arith.constant 0 : index
    %c0_4 = arith.constant 0 : index
    %3 = vector.load %arg3[%c0_2, %c0_3, %c0_4] : memref<3x28x28xf32, #tpu.memory_space<vmem>>, vector<1x28x28xf32>
    %4 = vector.shape_cast %3 : vector<1x28x28xf32> to vector<28x28xf32>
    %cst_5 = arith.constant dense<0.000000e+00> : vector<28x28xf32>
    %5 = tpu.matmul %4, %1, %cst_5 {dimension_numbers = #tpu.dot_dimension_numbers<[1], [0], [0], [1], [0, 0, 1, 1], [], []>} : vector<28x28xf32>, vector<28x28xf32>, vector<28x28xf32> -> vector<28x28xf32>
    %c0_6 = arith.constant 0 : index
    %c0_7 = arith.constant 0 : index
    %c0_8 = arith.constant 0 : index
    %6 = vector.load %arg2[%c0_6, %c0_7, %c0_8] : memref<3x28x224xf32, #tpu.memory_space<vmem>>, vector<1x28x224xf32>
    %7 = vector.shape_cast %6 : vector<1x28x224xf32> to vector<28x224xf32>
    %cst_9 = arith.constant dense<0.000000e+00> : vector<28x224xf32>
    %8 = tpu.matmul %5, %7, %cst_9 {dimension_numbers = #tpu.dot_dimension_numbers<[1], [0], [0], [1], [0, 0, 1, 1], [], []>} : vector<28x28xf32>, vector<28x224xf32>, vector<28x224xf32> -> vector<28x224xf32>
    %9 = arith.addf %2, %8 : vector<28x224xf32>
    %c1 = arith.constant 1 : index
    %c0_10 = arith.constant 0 : index
    %c0_11 = arith.constant 0 : index
    %10 = vector.load %arg3[%c1, %c0_10, %c0_11] : memref<3x28x28xf32, #tpu.memory_space<vmem>>, vector<1x28x28xf32>
    %11 = vector.shape_cast %10 : vector<1x28x28xf32> to vector<28x28xf32>
    %cst_12 = arith.constant dense<0.000000e+00> : vector<28x28xf32>
    %12 = tpu.matmul %11, %1, %cst_12 {dimension_numbers = #tpu.dot_dimension_numbers<[1], [0], [0], [1], [0, 0, 1, 1], [], []>} : vector<28x28xf32>, vector<28x28xf32>, vector<28x28xf32> -> vector<28x28xf32>
    %c1_13 = arith.constant 1 : index
    %c0_14 = arith.constant 0 : index
    %c0_15 = arith.constant 0 : index
    %13 = vector.load %arg2[%c1_13, %c0_14, %c0_15] : memref<3x28x224xf32, #tpu.memory_space<vmem>>, vector<1x28x224xf32>
    %14 = vector.shape_cast %13 : vector<1x28x224xf32> to vector<28x224xf32>
    %cst_16 = arith.constant dense<0.000000e+00> : vector<28x224xf32>
    %15 = tpu.matmul %12, %14, %cst_16 {dimension_numbers = #tpu.dot_dimension_numbers<[1], [0], [0], [1], [0, 0, 1, 1], [], []>} : vector<28x28xf32>, vector<28x224xf32>, vector<28x224xf32> -> vector<28x224xf32>
    %16 = arith.addf %9, %15 : vector<28x224xf32>
    %c2 = arith.constant 2 : index
    %c0_17 = arith.constant 0 : index
    %c0_18 = arith.constant 0 : index
    %17 = vector.load %arg3[%c2, %c0_17, %c0_18] : memref<3x28x28xf32, #tpu.memory_space<vmem>>, vector<1x28x28xf32>
    %18 = vector.shape_cast %17 : vector<1x28x28xf32> to vector<28x28xf32>
    %cst_19 = arith.constant dense<0.000000e+00> : vector<28x28xf32>
    %19 = tpu.matmul %18, %1, %cst_19 {dimension_numbers = #tpu.dot_dimension_numbers<[1], [0], [0], [1], [0, 0, 1, 1], [], []>} : vector<28x28xf32>, vector<28x28xf32>, vector<28x28xf32> -> vector<28x28xf32>
    %c2_20 = arith.constant 2 : index
    %c0_21 = arith.constant 0 : index
    %c0_22 = arith.constant 0 : index
    %20 = vector.load %arg2[%c2_20, %c0_21, %c0_22] : memref<3x28x224xf32, #tpu.memory_space<vmem>>, vector<1x28x224xf32>
    %21 = vector.shape_cast %20 : vector<1x28x224xf32> to vector<28x224xf32>
    %cst_23 = arith.constant dense<0.000000e+00> : vector<28x224xf32>
    %22 = tpu.matmul %19, %21, %cst_23 {dimension_numbers = #tpu.dot_dimension_numbers<[1], [0], [0], [1], [0, 0, 1, 1], [], []>} : vector<28x28xf32>, vector<28x224xf32>, vector<28x224xf32> -> vector<28x224xf32>
    %23 = arith.addf %16, %22 : vector<28x224xf32>
    %cst_24 = arith.constant 0.000000e+00 : f32
    %24 = vector.broadcast %cst_24 : f32 to vector<14x224xf32>
    %c0_25 = arith.constant 0 : index
    %c0_26 = arith.constant 0 : index
    %c0_27 = arith.constant 0 : index
    %25 = vector.load %arg5[%c0_25, %c0_26, %c0_27] : memref<3x14x28xf32, #tpu.memory_space<vmem>>, vector<1x14x28xf32>
    %26 = vector.shape_cast %25 : vector<1x14x28xf32> to vector<14x28xf32>
    %cst_28 = arith.constant dense<0.000000e+00> : vector<14x224xf32>
    %27 = tpu.matmul %26, %23, %cst_28 {dimension_numbers = #tpu.dot_dimension_numbers<[1], [0], [0], [1], [0, 0, 1, 1], [], []>} : vector<14x28xf32>, vector<28x224xf32>, vector<14x224xf32> -> vector<14x224xf32>
    %c0_29 = arith.constant 0 : index
    %c0_30 = arith.constant 0 : index
    %c0_31 = arith.constant 0 : index
    %28 = vector.load %arg4[%c0_29, %c0_30, %c0_31] : memref<3x224x224xf32, #tpu.memory_space<vmem>>, vector<1x224x224xf32>
    %29 = vector.shape_cast %28 : vector<1x224x224xf32> to vector<224x224xf32>
    %cst_32 = arith.constant dense<0.000000e+00> : vector<14x224xf32>
    %30 = tpu.matmul %27, %29, %cst_32 {dimension_numbers = #tpu.dot_dimension_numbers<[1], [0], [0], [1], [0, 0, 1, 1], [], []>} : vector<14x224xf32>, vector<224x224xf32>, vector<14x224xf32> -> vector<14x224xf32>
    %31 = arith.addf %24, %30 : vector<14x224xf32>
    %c1_33 = arith.constant 1 : index
    %c0_34 = arith.constant 0 : index
    %c0_35 = arith.constant 0 : index
    %32 = vector.load %arg5[%c1_33, %c0_34, %c0_35] : memref<3x14x28xf32, #tpu.memory_space<vmem>>, vector<1x14x28xf32>
    %33 = vector.shape_cast %32 : vector<1x14x28xf32> to vector<14x28xf32>
    %cst_36 = arith.constant dense<0.000000e+00> : vector<14x224xf32>
    %34 = tpu.matmul %33, %23, %cst_36 {dimension_numbers = #tpu.dot_dimension_numbers<[1], [0], [0], [1], [0, 0, 1, 1], [], []>} : vector<14x28xf32>, vector<28x224xf32>, vector<14x224xf32> -> vector<14x224xf32>
    %c1_37 = arith.constant 1 : index
    %c0_38 = arith.constant 0 : index
    %c0_39 = arith.constant 0 : index
    %35 = vector.load %arg4[%c1_37, %c0_38, %c0_39] : memref<3x224x224xf32, #tpu.memory_space<vmem>>, vector<1x224x224xf32>
    %36 = vector.shape_cast %35 : vector<1x224x224xf32> to vector<224x224xf32>
    %cst_40 = arith.constant dense<0.000000e+00> : vector<14x224xf32>
    %37 = tpu.matmul %34, %36, %cst_40 {dimension_numbers = #tpu.dot_dimension_numbers<[1], [0], [0], [1], [0, 0, 1, 1], [], []>} : vector<14x224xf32>, vector<224x224xf32>, vector<14x224xf32> -> vector<14x224xf32>
    %38 = arith.addf %31, %37 : vector<14x224xf32>
    %c2_41 = arith.constant 2 : index
    %c0_42 = arith.constant 0 : index
    %c0_43 = arith.constant 0 : index
    %39 = vector.load %arg5[%c2_41, %c0_42, %c0_43] : memref<3x14x28xf32, #tpu.memory_space<vmem>>, vector<1x14x28xf32>
    %40 = vector.shape_cast %39 : vector<1x14x28xf32> to vector<14x28xf32>
    %cst_44 = arith.constant dense<0.000000e+00> : vector<14x224xf32>
    %41 = tpu.matmul %40, %23, %cst_44 {dimension_numbers = #tpu.dot_dimension_numbers<[1], [0], [0], [1], [0, 0, 1, 1], [], []>} : vector<14x28xf32>, vector<28x224xf32>, vector<14x224xf32> -> vector<14x224xf32>
    %c2_45 = arith.constant 2 : index
    %c0_46 = arith.constant 0 : index
    %c0_47 = arith.constant 0 : index
    %42 = vector.load %arg4[%c2_45, %c0_46, %c0_47] : memref<3x224x224xf32, #tpu.memory_space<vmem>>, vector<1x224x224xf32>
    %43 = vector.shape_cast %42 : vector<1x224x224xf32> to vector<224x224xf32>
    %cst_48 = arith.constant dense<0.000000e+00> : vector<14x224xf32>
    %44 = tpu.matmul %41, %43, %cst_48 {dimension_numbers = #tpu.dot_dimension_numbers<[1], [0], [0], [1], [0, 0, 1, 1], [], []>} : vector<14x224xf32>, vector<224x224xf32>, vector<14x224xf32> -> vector<14x224xf32>
    %45 = arith.addf %38, %44 : vector<14x224xf32>
    %cst_49 = arith.constant 0.000000e+00 : f32
    %46 = vector.broadcast %cst_49 : f32 to vector<14x224xf32>
    %47 = arith.maximumf %45, %46 : vector<14x224xf32>
    %cst_50 = arith.constant 0.000000e+00 : f32
    %48 = vector.broadcast %cst_50 : f32 to vector<7x224xf32>
    %c0_51 = arith.constant 0 : index
    %c0_52 = arith.constant 0 : index
    %c0_53 = arith.constant 0 : index
    %49 = vector.load %arg7[%c0_51, %c0_52, %c0_53] : memref<3x7x14xf32, #tpu.memory_space<vmem>>, vector<1x7x14xf32>
    %50 = vector.shape_cast %49 : vector<1x7x14xf32> to vector<7x14xf32>
    %cst_54 = arith.constant dense<0.000000e+00> : vector<7x224xf32>
    %51 = tpu.matmul %50, %47, %cst_54 {dimension_numbers = #tpu.dot_dimension_numbers<[1], [0], [0], [1], [0, 0, 1, 1], [], []>} : vector<7x14xf32>, vector<14x224xf32>, vector<7x224xf32> -> vector<7x224xf32>
    %c0_55 = arith.constant 0 : index
    %c0_56 = arith.constant 0 : index
    %c0_57 = arith.constant 0 : index
    %52 = vector.load %arg6[%c0_55, %c0_56, %c0_57] : memref<3x224x224xf32, #tpu.memory_space<vmem>>, vector<1x224x224xf32>
    %53 = vector.shape_cast %52 : vector<1x224x224xf32> to vector<224x224xf32>
    %cst_58 = arith.constant dense<0.000000e+00> : vector<7x224xf32>
    %54 = tpu.matmul %51, %53, %cst_58 {dimension_numbers = #tpu.dot_dimension_numbers<[1], [0], [0], [1], [0, 0, 1, 1], [], []>} : vector<7x224xf32>, vector<224x224xf32>, vector<7x224xf32> -> vector<7x224xf32>
    %55 = arith.addf %48, %54 : vector<7x224xf32>
    %c1_59 = arith.constant 1 : index
    %c0_60 = arith.constant 0 : index
    %c0_61 = arith.constant 0 : index
    %56 = vector.load %arg7[%c1_59, %c0_60, %c0_61] : memref<3x7x14xf32, #tpu.memory_space<vmem>>, vector<1x7x14xf32>
    %57 = vector.shape_cast %56 : vector<1x7x14xf32> to vector<7x14xf32>
    %cst_62 = arith.constant dense<0.000000e+00> : vector<7x224xf32>
    %58 = tpu.matmul %57, %47, %cst_62 {dimension_numbers = #tpu.dot_dimension_numbers<[1], [0], [0], [1], [0, 0, 1, 1], [], []>} : vector<7x14xf32>, vector<14x224xf32>, vector<7x224xf32> -> vector<7x224xf32>
    %c1_63 = arith.constant 1 : index
    %c0_64 = arith.constant 0 : index
    %c0_65 = arith.constant 0 : index
    %59 = vector.load %arg6[%c1_63, %c0_64, %c0_65] : memref<3x224x224xf32, #tpu.memory_space<vmem>>, vector<1x224x224xf32>
    %60 = vector.shape_cast %59 : vector<1x224x224xf32> to vector<224x224xf32>
    %cst_66 = arith.constant dense<0.000000e+00> : vector<7x224xf32>
    %61 = tpu.matmul %58, %60, %cst_66 {dimension_numbers = #tpu.dot_dimension_numbers<[1], [0], [0], [1], [0, 0, 1, 1], [], []>} : vector<7x224xf32>, vector<224x224xf32>, vector<7x224xf32> -> vector<7x224xf32>
    %62 = arith.addf %55, %61 : vector<7x224xf32>
    %c2_67 = arith.constant 2 : index
    %c0_68 = arith.constant 0 : index
    %c0_69 = arith.constant 0 : index
    %63 = vector.load %arg7[%c2_67, %c0_68, %c0_69] : memref<3x7x14xf32, #tpu.memory_space<vmem>>, vector<1x7x14xf32>
    %64 = vector.shape_cast %63 : vector<1x7x14xf32> to vector<7x14xf32>
    %cst_70 = arith.constant dense<0.000000e+00> : vector<7x224xf32>
    %65 = tpu.matmul %64, %47, %cst_70 {dimension_numbers = #tpu.dot_dimension_numbers<[1], [0], [0], [1], [0, 0, 1, 1], [], []>} : vector<7x14xf32>, vector<14x224xf32>, vector<7x224xf32> -> vector<7x224xf32>
    %c2_71 = arith.constant 2 : index
    %c0_72 = arith.constant 0 : index
    %c0_73 = arith.constant 0 : index
    %66 = vector.load %arg6[%c2_71, %c0_72, %c0_73] : memref<3x224x224xf32, #tpu.memory_space<vmem>>, vector<1x224x224xf32>
    %67 = vector.shape_cast %66 : vector<1x224x224xf32> to vector<224x224xf32>
    %cst_74 = arith.constant dense<0.000000e+00> : vector<7x224xf32>
    %68 = tpu.matmul %65, %67, %cst_74 {dimension_numbers = #tpu.dot_dimension_numbers<[1], [0], [0], [1], [0, 0, 1, 1], [], []>} : vector<7x224xf32>, vector<224x224xf32>, vector<7x224xf32> -> vector<7x224xf32>
    %69 = arith.addf %62, %68 : vector<7x224xf32>
    %cst_75 = arith.constant 0.000000e+00 : f32
    %70 = vector.broadcast %cst_75 : f32 to vector<7x224xf32>
    %71 = arith.maximumf %69, %70 : vector<7x224xf32>
    %c0_76 = arith.constant 0 : index
    %c0_77 = arith.constant 0 : index
    %72 = vector.load %arg9[%c0_76, %c0_77] : memref<1x10xf32, #tpu.memory_space<vmem>>, vector<1x10xf32>
    %73 = vector.extract_strided_slice %71 {offsets = [0, 0], sizes = [1, 224], strides = [1, 1]} : vector<7x224xf32> to vector<1x224xf32>
    %c0_78 = arith.constant 0 : index
    %c0_79 = arith.constant 0 : index
    %c0_80 = arith.constant 0 : index
    %74 = vector.load %arg8[%c0_78, %c0_79, %c0_80] : memref<7x224x10xf32, #tpu.memory_space<vmem>>, vector<1x224x10xf32>
    %75 = vector.shape_cast %74 : vector<1x224x10xf32> to vector<224x10xf32>
    %cst_81 = arith.constant dense<0.000000e+00> : vector<1x10xf32>
    %76 = tpu.matmul %73, %75, %cst_81 {dimension_numbers = #tpu.dot_dimension_numbers<[1], [0], [0], [1], [0, 0, 1, 1], [], []>} : vector<1x224xf32>, vector<224x10xf32>, vector<1x10xf32> -> vector<1x10xf32>
    %77 = arith.addf %72, %76 : vector<1x10xf32>
    %78 = vector.extract_strided_slice %71 {offsets = [1, 0], sizes = [1, 224], strides = [1, 1]} : vector<7x224xf32> to vector<1x224xf32>
    %c1_82 = arith.constant 1 : index
    %c0_83 = arith.constant 0 : index
    %c0_84 = arith.constant 0 : index
    %79 = vector.load %arg8[%c1_82, %c0_83, %c0_84] : memref<7x224x10xf32, #tpu.memory_space<vmem>>, vector<1x224x10xf32>
    %80 = vector.shape_cast %79 : vector<1x224x10xf32> to vector<224x10xf32>
    %cst_85 = arith.constant dense<0.000000e+00> : vector<1x10xf32>
    %81 = tpu.matmul %78, %80, %cst_85 {dimension_numbers = #tpu.dot_dimension_numbers<[1], [0], [0], [1], [0, 0, 1, 1], [], []>} : vector<1x224xf32>, vector<224x10xf32>, vector<1x10xf32> -> vector<1x10xf32>
    %82 = arith.addf %77, %81 : vector<1x10xf32>
    %83 = vector.extract_strided_slice %71 {offsets = [2, 0], sizes = [1, 224], strides = [1, 1]} : vector<7x224xf32> to vector<1x224xf32>
    %c2_86 = arith.constant 2 : index
    %c0_87 = arith.constant 0 : index
    %c0_88 = arith.constant 0 : index
    %84 = vector.load %arg8[%c2_86, %c0_87, %c0_88] : memref<7x224x10xf32, #tpu.memory_space<vmem>>, vector<1x224x10xf32>
    %85 = vector.shape_cast %84 : vector<1x224x10xf32> to vector<224x10xf32>
    %cst_89 = arith.constant dense<0.000000e+00> : vector<1x10xf32>
    %86 = tpu.matmul %83, %85, %cst_89 {dimension_numbers = #tpu.dot_dimension_numbers<[1], [0], [0], [1], [0, 0, 1, 1], [], []>} : vector<1x224xf32>, vector<224x10xf32>, vector<1x10xf32> -> vector<1x10xf32>
    %87 = arith.addf %82, %86 : vector<1x10xf32>
    %88 = vector.extract_strided_slice %71 {offsets = [3, 0], sizes = [1, 224], strides = [1, 1]} : vector<7x224xf32> to vector<1x224xf32>
    %c3 = arith.constant 3 : index
    %c0_90 = arith.constant 0 : index
    %c0_91 = arith.constant 0 : index
    %89 = vector.load %arg8[%c3, %c0_90, %c0_91] : memref<7x224x10xf32, #tpu.memory_space<vmem>>, vector<1x224x10xf32>
    %90 = vector.shape_cast %89 : vector<1x224x10xf32> to vector<224x10xf32>
    %cst_92 = arith.constant dense<0.000000e+00> : vector<1x10xf32>
    %91 = tpu.matmul %88, %90, %cst_92 {dimension_numbers = #tpu.dot_dimension_numbers<[1], [0], [0], [1], [0, 0, 1, 1], [], []>} : vector<1x224xf32>, vector<224x10xf32>, vector<1x10xf32> -> vector<1x10xf32>
    %92 = arith.addf %87, %91 : vector<1x10xf32>
    %93 = vector.extract_strided_slice %71 {offsets = [4, 0], sizes = [1, 224], strides = [1, 1]} : vector<7x224xf32> to vector<1x224xf32>
    %c4 = arith.constant 4 : index
    %c0_93 = arith.constant 0 : index
    %c0_94 = arith.constant 0 : index
    %94 = vector.load %arg8[%c4, %c0_93, %c0_94] : memref<7x224x10xf32, #tpu.memory_space<vmem>>, vector<1x224x10xf32>
    %95 = vector.shape_cast %94 : vector<1x224x10xf32> to vector<224x10xf32>
    %cst_95 = arith.constant dense<0.000000e+00> : vector<1x10xf32>
    %96 = tpu.matmul %93, %95, %cst_95 {dimension_numbers = #tpu.dot_dimension_numbers<[1], [0], [0], [1], [0, 0, 1, 1], [], []>} : vector<1x224xf32>, vector<224x10xf32>, vector<1x10xf32> -> vector<1x10xf32>
    %97 = arith.addf %92, %96 : vector<1x10xf32>
    %98 = vector.extract_strided_slice %71 {offsets = [5, 0], sizes = [1, 224], strides = [1, 1]} : vector<7x224xf32> to vector<1x224xf32>
    %c5 = arith.constant 5 : index
    %c0_96 = arith.constant 0 : index
    %c0_97 = arith.constant 0 : index
    %99 = vector.load %arg8[%c5, %c0_96, %c0_97] : memref<7x224x10xf32, #tpu.memory_space<vmem>>, vector<1x224x10xf32>
    %100 = vector.shape_cast %99 : vector<1x224x10xf32> to vector<224x10xf32>
    %cst_98 = arith.constant dense<0.000000e+00> : vector<1x10xf32>
    %101 = tpu.matmul %98, %100, %cst_98 {dimension_numbers = #tpu.dot_dimension_numbers<[1], [0], [0], [1], [0, 0, 1, 1], [], []>} : vector<1x224xf32>, vector<224x10xf32>, vector<1x10xf32> -> vector<1x10xf32>
    %102 = arith.addf %97, %101 : vector<1x10xf32>
    %103 = vector.extract_strided_slice %71 {offsets = [6, 0], sizes = [1, 224], strides = [1, 1]} : vector<7x224xf32> to vector<1x224xf32>
    %c6 = arith.constant 6 : index
    %c0_99 = arith.constant 0 : index
    %c0_100 = arith.constant 0 : index
    %104 = vector.load %arg8[%c6, %c0_99, %c0_100] : memref<7x224x10xf32, #tpu.memory_space<vmem>>, vector<1x224x10xf32>
    %105 = vector.shape_cast %104 : vector<1x224x10xf32> to vector<224x10xf32>
    %cst_101 = arith.constant dense<0.000000e+00> : vector<1x10xf32>
    %106 = tpu.matmul %103, %105, %cst_101 {dimension_numbers = #tpu.dot_dimension_numbers<[1], [0], [0], [1], [0, 0, 1, 1], [], []>} : vector<1x224xf32>, vector<224x10xf32>, vector<1x10xf32> -> vector<1x10xf32>
    %107 = arith.addf %102, %106 : vector<1x10xf32>
    %108 = vector.shape_cast %107 : vector<1x10xf32> to vector<1x1x10xf32>
    %c0_102 = arith.constant 0 : index
    %c0_103 = arith.constant 0 : index
    %c0_104 = arith.constant 0 : index
    %109 = vector.load %arg10[%c0_102, %c0_103, %c0_104] : memref<1x1x10xf32, #tpu.memory_space<vmem>>, vector<1x1x10xf32>
    tpu.vector_store %arg10[%c0_102, %c0_103, %c0_104], %108 {strides = array<i32>} : memref<1x1x10xf32, #tpu.memory_space<vmem>>, vector<1x1x10xf32>,
    return
  }
  func.func @transform_0(%arg0: i32) -> (i32, i32, i32) {
    %c0_i32 = arith.constant 0 : i32
    %c0_i32_0 = arith.constant 0 : i32
    %c0_i32_1 = arith.constant 0 : i32
    return %arg0, %c0_i32, %c0_i32_0 : i32, i32, i32
  }
  func.func @transform_1(%arg0: i32) -> (i32, i32, i32) {
    %c0_i32 = arith.constant 0 : i32
    %c0_i32_0 = arith.constant 0 : i32
    %c0_i32_1 = arith.constant 0 : i32
    %c0_i32_2 = arith.constant 0 : i32
    return %c0_i32, %c0_i32_0, %c0_i32_1 : i32, i32, i32
  }
  func.func @transform_2(%arg0: i32) -> (i32, i32, i32) {
    %c0_i32 = arith.constant 0 : i32
    %c0_i32_0 = arith.constant 0 : i32
    %c0_i32_1 = arith.constant 0 : i32
    %c0_i32_2 = arith.constant 0 : i32
    return %c0_i32, %c0_i32_0, %c0_i32_1 : i32, i32, i32
  }
  func.func @transform_3(%arg0: i32) -> (i32, i32, i32) {
    %c0_i32 = arith.constant 0 : i32
    %c0_i32_0 = arith.constant 0 : i32
    %c0_i32_1 = arith.constant 0 : i32
    %c0_i32_2 = arith.constant 0 : i32
    return %c0_i32, %c0_i32_0, %c0_i32_1 : i32, i32, i32
  }
  func.func @transform_4(%arg0: i32) -> (i32, i32, i32) {
    %c0_i32 = arith.constant 0 : i32
    %c0_i32_0 = arith.constant 0 : i32
    %c0_i32_1 = arith.constant 0 : i32
    %c0_i32_2 = arith.constant 0 : i32
    return %c0_i32, %c0_i32_0, %c0_i32_1 : i32, i32, i32
  }
  func.func @transform_5(%arg0: i32) -> (i32, i32, i32) {
    %c0_i32 = arith.constant 0 : i32
    %c0_i32_0 = arith.constant 0 : i32
    %c0_i32_1 = arith.constant 0 : i32
    %c0_i32_2 = arith.constant 0 : i32
    return %c0_i32, %c0_i32_0, %c0_i32_1 : i32, i32, i32
  }
  func.func @transform_6(%arg0: i32) -> (i32, i32, i32) {
    %c0_i32 = arith.constant 0 : i32
    %c0_i32_0 = arith.constant 0 : i32
    %c0_i32_1 = arith.constant 0 : i32
    %c0_i32_2 = arith.constant 0 : i32
    return %c0_i32, %c0_i32_0, %c0_i32_1 : i32, i32, i32
  }
  func.func @transform_7(%arg0: i32) -> (i32, i32, i32) {
    %c0_i32 = arith.constant 0 : i32
    %c0_i32_0 = arith.constant 0 : i32
    %c0_i32_1 = arith.constant 0 : i32
    %c0_i32_2 = arith.constant 0 : i32
    return %c0_i32, %c0_i32_0, %c0_i32_1 : i32, i32, i32
  }
  func.func @transform_8(%arg0: i32) -> (i32, i32) {
    %c0_i32 = arith.constant 0 : i32
    %c0_i32_0 = arith.constant 0 : i32
    %c0_i32_1 = arith.constant 0 : i32
    return %c0_i32, %c0_i32_0 : i32, i32
  }
  func.func @transform_9(%arg0: i32) -> (i32, i32, i32) {
    %c0_i32 = arith.constant 0 : i32
    %c0_i32_0 = arith.constant 0 : i32
    %c0_i32_1 = arith.constant 0 : i32
    return %arg0, %c0_i32, %c0_i32_0 : i32, i32, i32
  }
}

</mosaic_0001>

<llo_original>
// kernel: simple_model_forward.1
$region0: #{simple_model_forward.1}
  #allocation0 [shape = 'u32[]', space=smem, size = 0x4, offset = 0x4, fixed_abs, tag = 'smem constant byte address 0x4 - core index']
  #allocation1 [shape = 'u32[72,128]{1,0:T(1,128)}', space=vmem, size = 0x9000, scoped, tag = 'internal scratch']
  %s0 = inlined_call_operand.vmem [shape: f32[2,28,28], index: 0, kind: input, shape index: {}]
  %s1 = inlined_call_operand.vmem [shape: f32[3,28,224], index: 1, kind: input, shape index: {}]
  %s2 = inlined_call_operand.vmem [shape: f32[3,28,28], index: 2, kind: input, shape index: {}]
  %s3 = inlined_call_operand.vmem [shape: f32[3,224,224], index: 3, kind: input, shape index: {}]
  %s4 = inlined_call_operand.vmem [shape: f32[3,14,28], index: 4, kind: input, shape index: {}]
  %s5 = inlined_call_operand.vmem [shape: f32[3,224,224], index: 5, kind: input, shape index: {}]
  %s6 = inlined_call_operand.vmem [shape: f32[3,7,14], index: 6, kind: input, shape index: {}]
  %s7 = inlined_call_operand.vmem [shape: f32[7,224,10], index: 7, kind: input, shape index: {}]
  %s8 = inlined_call_operand.vmem [shape: f32[1,10], index: 8, kind: input, shape index: {}]
  %s9 = inlined_call_operand.hbm [shape: f32[2,1,10], index: 9, kind: output, shape index: {}]
  %s10 = sld [smem:[#allocation0]]
  $region69: #{simple_model_forward.1} parent=0
    _
  %s12 = ssub.s32 1, %s10
  %s13 = scalar_select 0, %s12, %s10
  $region1: #{simple_model_forward.1} parent=0
    #allocation2 [shape = 'u8[1024]{0}', space=vmem, size = 0x400, scoped, tag = 'output window, operand 0']
    #allocation3 [shape = 's32[2]{0}', space=sflag, size = 0x8, scoped, tag = 'scoped memory for simple_model_forward.1']
    %14 = vsyncpa [#allocation3], 0
    %s15 = scalar_lea.sflag [#allocation3], 1
    %16 = vsyncpa %s15, 0
    loop: start=0, step=1, limit=4
    $region2: #{simple_model_forward.1} parent=1 // loop_pre_header
      _
    $region3: #{simple_model_forward.1} parent=1 // loop_header
      %s18 = sphi 0, %s22
      %p19 = scmp.ge.s32.totalorder %s18, 4
      %s28 = sphi 0, %s30
      %s31 = sphi 0, %s28
      %s32 = sphi 0, %s31
      %s48 = sphi 0, %s32
      %s52 = sphi 0, %s52
      %s54 = sphi 0, %s52
      %s55 = sphi 0, %s54
      %s69 = sphi 0, %s55
      %s73 = sphi 0, %s73
      %s75 = sphi 0, %s73
      %s76 = sphi 0, %s75
      %s90 = sphi 0, %s76
      %s94 = sphi 0, %s94
      %s96 = sphi 0, %s94
      %s97 = sphi 0, %s96
      %s111 = sphi 0, %s97
      %s115 = sphi 0, %s115
      %s117 = sphi 0, %s115
      %s118 = sphi 0, %s117
      %s132 = sphi 0, %s118
      %s136 = sphi 0, %s136
      %s138 = sphi 0, %s136
      %s139 = sphi 0, %s138
      %s153 = sphi 0, %s139
      %s157 = sphi 0, %s157
      %s159 = sphi 0, %s157
      %s160 = sphi 0, %s159
      %s174 = sphi 0, %s160
      %s178 = sphi 0, %s178
      %s180 = sphi 0, %s178
      %s181 = sphi 0, %s180
      %s195 = sphi 0, %s181
      %s199 = sphi 0, %s199
      %s201 = sphi 0, %s199
      %s202 = sphi 0, %s201
      %s216 = sphi 0, %s202
      %s222 = sphi 0, %s224
      %s225 = sphi 0, %s222
      %s226 = sphi 0, %s225
      %s242 = sphi 0, %s226
    $region4: #{simple_model_forward.1} parent=1 // loop_header_branch
      %21 = sbr.rel (%p19) target = $region8
    $region5: #{simple_model_forward.1} parent=1 // loop_body
      %s23 = ssub.s32 %s18, 1
      %s24 = ssub.s32 %s18, 2
      %s25 = sadd.s32 %s18, 1
      %s26 = ssub.s32 %s18, %s25
      %p27 = scmp.eq.s32.totalorder %s26, 0
      %s29 = sadd.s32 %s28, 1
      %s30 = scalar_select %p27, %s28, %s29
      %p33 = pneg %p27
      %p34 = scmp.eq.s32.totalorder %s18, 1
      %p35 = por %p33, %p34
      %p36 = scmp.ne.s32.totalorder %s28, %s31
      %p37 = scmp.eq.s32.totalorder %s18, 0
      %p38 = por %p36, %p37
      %p39 = scmp.ne.s32.totalorder %s28, %s31
      %p40 = scmp.eq.s32.totalorder %s23, 1
      %p41 = por %p39, %p40
      %p42 = scmp.ne.s32.totalorder %s31, %s32
      %p43 = scmp.eq.s32.totalorder %s23, 0
      %p44 = por %p42, %p43
      %p45 = scmp.ne.s32.totalorder %s31, %s32
      %p46 = scmp.eq.s32.totalorder %s24, 1
      %p47 = por %p45, %p46
      %p49 = scmp.ne.s32.totalorder %s32, %s48
      %p50 = scmp.eq.s32.totalorder %s24, 0
      %p51 = por %p49, %p50
      %s53 = sadd.s32 %s52, 1
      %p56 = scmp.eq.s32.totalorder %s18, 1
      %p57 = scmp.ne.s32.totalorder %s52, %s54
      %p58 = scmp.eq.s32.totalorder %s18, 0
      %p59 = por %p57, %p58
      %p60 = scmp.ne.s32.totalorder %s52, %s54
      %p61 = scmp.eq.s32.totalorder %s23, 1
      %p62 = por %p60, %p61
      %p63 = scmp.ne.s32.totalorder %s54, %s55
      %p64 = scmp.eq.s32.totalorder %s23, 0
      %p65 = por %p63, %p64
      %p66 = scmp.ne.s32.totalorder %s54, %s55
      %p67 = scmp.eq.s32.totalorder %s24, 1
      %p68 = por %p66, %p67
      %p70 = scmp.ne.s32.totalorder %s55, %s69
      %p71 = scmp.eq.s32.totalorder %s24, 0
      %p72 = por %p70, %p71
      %s74 = sadd.s32 %s73, 1
      %p77 = scmp.eq.s32.totalorder %s18, 1
      %p78 = scmp.ne.s32.totalorder %s73, %s75
      %p79 = scmp.eq.s32.totalorder %s18, 0
      %p80 = por %p78, %p79
      %p81 = scmp.ne.s32.totalorder %s73, %s75
      %p82 = scmp.eq.s32.totalorder %s23, 1
      %p83 = por %p81, %p82
      %p84 = scmp.ne.s32.totalorder %s75, %s76
      %p85 = scmp.eq.s32.totalorder %s23, 0
      %p86 = por %p84, %p85
      %p87 = scmp.ne.s32.totalorder %s75, %s76
      %p88 = scmp.eq.s32.totalorder %s24, 1
      %p89 = por %p87, %p88
      %p91 = scmp.ne.s32.totalorder %s76, %s90
      %p92 = scmp.eq.s32.totalorder %s24, 0
      %p93 = por %p91, %p92
      %s95 = sadd.s32 %s94, 1
      %p98 = scmp.eq.s32.totalorder %s18, 1
      %p99 = scmp.ne.s32.totalorder %s94, %s96
      %p100 = scmp.eq.s32.totalorder %s18, 0
      %p101 = por %p99, %p100
      %p102 = scmp.ne.s32.totalorder %s94, %s96
      %p103 = scmp.eq.s32.totalorder %s23, 1
      %p104 = por %p102, %p103
      %p105 = scmp.ne.s32.totalorder %s96, %s97
      %p106 = scmp.eq.s32.totalorder %s23, 0
      %p107 = por %p105, %p106
      %p108 = scmp.ne.s32.totalorder %s96, %s97
      %p109 = scmp.eq.s32.totalorder %s24, 1
      %p110 = por %p108, %p109
      %p112 = scmp.ne.s32.totalorder %s97, %s111
      %p113 = scmp.eq.s32.totalorder %s24, 0
      %p114 = por %p112, %p113
      %s116 = sadd.s32 %s115, 1
      %p119 = scmp.eq.s32.totalorder %s18, 1
      %p120 = scmp.ne.s32.totalorder %s115, %s117
      %p121 = scmp.eq.s32.totalorder %s18, 0
      %p122 = por %p120, %p121
      %p123 = scmp.ne.s32.totalorder %s115, %s117
      %p124 = scmp.eq.s32.totalorder %s23, 1
      %p125 = por %p123, %p124
      %p126 = scmp.ne.s32.totalorder %s117, %s118
      %p127 = scmp.eq.s32.totalorder %s23, 0
      %p128 = por %p126, %p127
      %p129 = scmp.ne.s32.totalorder %s117, %s118
      %p130 = scmp.eq.s32.totalorder %s24, 1
      %p131 = por %p129, %p130
      %p133 = scmp.ne.s32.totalorder %s118, %s132
      %p134 = scmp.eq.s32.totalorder %s24, 0
      %p135 = por %p133, %p134
      %s137 = sadd.s32 %s136, 1
      %p140 = scmp.eq.s32.totalorder %s18, 1
      %p141 = scmp.ne.s32.totalorder %s136, %s138
      %p142 = scmp.eq.s32.totalorder %s18, 0
      %p143 = por %p141, %p142
      %p144 = scmp.ne.s32.totalorder %s136, %s138
      %p145 = scmp.eq.s32.totalorder %s23, 1
      %p146 = por %p144, %p145
      %p147 = scmp.ne.s32.totalorder %s138, %s139
      %p148 = scmp.eq.s32.totalorder %s23, 0
      %p149 = por %p147, %p148
      %p150 = scmp.ne.s32.totalorder %s138, %s139
      %p151 = scmp.eq.s32.totalorder %s24, 1
      %p152 = por %p150, %p151
      %p154 = scmp.ne.s32.totalorder %s139, %s153
      %p155 = scmp.eq.s32.totalorder %s24, 0
      %p156 = por %p154, %p155
      %s158 = sadd.s32 %s157, 1
      %p161 = scmp.eq.s32.totalorder %s18, 1
      %p162 = scmp.ne.s32.totalorder %s157, %s159
      %p163 = scmp.eq.s32.totalorder %s18, 0
      %p164 = por %p162, %p163
      %p165 = scmp.ne.s32.totalorder %s157, %s159
      %p166 = scmp.eq.s32.totalorder %s23, 1
      %p167 = por %p165, %p166
      %p168 = scmp.ne.s32.totalorder %s159, %s160
      %p169 = scmp.eq.s32.totalorder %s23, 0
      %p170 = por %p168, %p169
      %p171 = scmp.ne.s32.totalorder %s159, %s160
      %p172 = scmp.eq.s32.totalorder %s24, 1
      %p173 = por %p171, %p172
      %p175 = scmp.ne.s32.totalorder %s160, %s174
      %p176 = scmp.eq.s32.totalorder %s24, 0
      %p177 = por %p175, %p176
      %s179 = sadd.s32 %s178, 1
      %p182 = scmp.eq.s32.totalorder %s18, 1
      %p183 = scmp.ne.s32.totalorder %s178, %s180
      %p184 = scmp.eq.s32.totalorder %s18, 0
      %p185 = por %p183, %p184
      %p186 = scmp.ne.s32.totalorder %s178, %s180
      %p187 = scmp.eq.s32.totalorder %s23, 1
      %p188 = por %p186, %p187
      %p189 = scmp.ne.s32.totalorder %s180, %s181
      %p190 = scmp.eq.s32.totalorder %s23, 0
      %p191 = por %p189, %p190
      %p192 = scmp.ne.s32.totalorder %s180, %s181
      %p193 = scmp.eq.s32.totalorder %s24, 1
      %p194 = por %p192, %p193
      %p196 = scmp.ne.s32.totalorder %s181, %s195
      %p197 = scmp.eq.s32.totalorder %s24, 0
      %p198 = por %p196, %p197
      %s200 = sadd.s32 %s199, 1
      %p203 = scmp.eq.s32.totalorder %s18, 1
      %p204 = scmp.ne.s32.totalorder %s199, %s201
      %p205 = scmp.eq.s32.totalorder %s18, 0
      %p206 = por %p204, %p205
      %p207 = scmp.ne.s32.totalorder %s199, %s201
      %p208 = scmp.eq.s32.totalorder %s23, 1
      %p209 = por %p207, %p208
      %p210 = scmp.ne.s32.totalorder %s201, %s202
      %p211 = scmp.eq.s32.totalorder %s23, 0
      %p212 = por %p210, %p211
      %p213 = scmp.ne.s32.totalorder %s201, %s202
      %p214 = scmp.eq.s32.totalorder %s24, 1
      %p215 = por %p213, %p214
      %p217 = scmp.ne.s32.totalorder %s202, %s216
      %p218 = scmp.eq.s32.totalorder %s24, 0
      %p219 = por %p217, %p218
      %s220 = ssub.s32 %s18, %s25
      %p221 = scmp.eq.s32.totalorder %s220, 0
      %s223 = sadd.s32 %s222, 1
      %s224 = scalar_select %p221, %s222, %s223
      %p227 = pneg %p221
      %p228 = scmp.eq.s32.totalorder %s18, 1
      %p229 = por %p227, %p228
      %p230 = scmp.ne.s32.totalorder %s222, %s225
      %p231 = scmp.eq.s32.totalorder %s18, 0
      %p232 = por %p230, %p231
      %p233 = scmp.ne.s32.totalorder %s222, %s225
      %p234 = scmp.eq.s32.totalorder %s23, 1
      %p235 = por %p233, %p234
      %p236 = scmp.ne.s32.totalorder %s225, %s226
      %p237 = scmp.eq.s32.totalorder %s23, 0
      %p238 = por %p236, %p237
      %p239 = scmp.ne.s32.totalorder %s225, %s226
      %p240 = scmp.eq.s32.totalorder %s24, 1
      %p241 = por %p239, %p240
      %p243 = scmp.ne.s32.totalorder %s226, %s242
      %p244 = scmp.eq.s32.totalorder %s24, 0
      %p245 = por %p243, %p244
      %p246 = scmp.le.s32.totalorder 1, %s18
      %p247 = scmp.lt.s32.totalorder %s18, 3
      %p248 = pnand %p246, %p247
      %p249 = pneg %p248
      // Predicated region
      $region9: #{simple_model_forward.1} parent=5 // pred_check
        _
      $region10: #{simple_model_forward.1} parent=5 // pred_check_branch
        %251 = sbr.rel (%p248) target = $region12
      $region11: #{simple_model_forward.1} parent=5 // pred_region
        %s252 = ssub.s32 %s18, 1
        // Predicated region
        $region13: #{simple_model_forward.1} parent=11 // pred_check
          %p253 = pneg %p65
        $region14: #{simple_model_forward.1} parent=11 // pred_check_branch
          %255 = sbr.rel (%p253) target = $region16
        $region15: #{simple_model_forward.1} parent=11 // pred_region
          _
        $region16: #{simple_model_forward.1} parent=11 // pred_fallthru
          _
        // Predicated region
        $region17: #{simple_model_forward.1} parent=11 // pred_check
          %p256 = pneg %p86
        $region18: #{simple_model_forward.1} parent=11 // pred_check_branch
          %258 = sbr.rel (%p256) target = $region20
        $region19: #{simple_model_forward.1} parent=11 // pred_region
          _
        $region20: #{simple_model_forward.1} parent=11 // pred_fallthru
          _
        // Predicated region
        $region21: #{simple_model_forward.1} parent=11 // pred_check
          %p259 = pneg %p107
        $region22: #{simple_model_forward.1} parent=11 // pred_check_branch
          %261 = sbr.rel (%p259) target = $region24
        $region23: #{simple_model_forward.1} parent=11 // pred_region
          _
        $region24: #{simple_model_forward.1} parent=11 // pred_fallthru
          _
        // Predicated region
        $region25: #{simple_model_forward.1} parent=11 // pred_check
          %p262 = pneg %p128
        $region26: #{simple_model_forward.1} parent=11 // pred_check_branch
          %264 = sbr.rel (%p262) target = $region28
        $region27: #{simple_model_forward.1} parent=11 // pred_region
          _
        $region28: #{simple_model_forward.1} parent=11 // pred_fallthru
          _
        // Predicated region
        $region29: #{simple_model_forward.1} parent=11 // pred_check
          %p265 = pneg %p149
        $region30: #{simple_model_forward.1} parent=11 // pred_check_branch
          %267 = sbr.rel (%p265) target = $region32
        $region31: #{simple_model_forward.1} parent=11 // pred_region
          _
        $region32: #{simple_model_forward.1} parent=11 // pred_fallthru
          _
        // Predicated region
        $region33: #{simple_model_forward.1} parent=11 // pred_check
          %p268 = pneg %p170
        $region34: #{simple_model_forward.1} parent=11 // pred_check_branch
          %270 = sbr.rel (%p268) target = $region36
        $region35: #{simple_model_forward.1} parent=11 // pred_region
          _
        $region36: #{simple_model_forward.1} parent=11 // pred_fallthru
          _
        // Predicated region
        $region37: #{simple_model_forward.1} parent=11 // pred_check
          %p271 = pneg %p191
        $region38: #{simple_model_forward.1} parent=11 // pred_check_branch
          %273 = sbr.rel (%p271) target = $region40
        $region39: #{simple_model_forward.1} parent=11 // pred_region
          _
        $region40: #{simple_model_forward.1} parent=11 // pred_fallthru
          _
        // Predicated region
        $region41: #{simple_model_forward.1} parent=11 // pred_check
          %p274 = pneg %p212
        $region42: #{simple_model_forward.1} parent=11 // pred_check_branch
          %276 = sbr.rel (%p274) target = $region44
        $region43: #{simple_model_forward.1} parent=11 // pred_region
          _
        $region44: #{simple_model_forward.1} parent=11 // pred_fallthru
          _
      $region12: #{simple_model_forward.1} parent=5 // pred_fallthru
        _
      %p277 = scmp.lt.s32.totalorder %s18, 2
      // Predicated region
      $region45: #{simple_model_forward.1} parent=5 // pred_check
        %p278 = pneg %p277
      $region46: #{simple_model_forward.1} parent=5 // pred_check_branch
        %280 = sbr.rel (%p278) target = $region48
      $region47: #{simple_model_forward.1} parent=5 // pred_region
        // Predicated region
        $region49: #{simple_model_forward.1} parent=47 // pred_check
          %p281 = pneg %p38
        $region50: #{simple_model_forward.1} parent=47 // pred_check_branch
          %283 = sbr.rel (%p281) target = $region52
        $region51: #{simple_model_forward.1} parent=47 // pred_region
          %p284 = scmp.lt.s32.totalorder %s18, 1
          %s285 = scalar_select %p284, %s18, 1
          %s286 = smul.addr %s285, 4
          %s287 = smul.addr %s286, 8
          %s288 = scalar_lea.vmem %s0, %s287
        $region52: #{simple_model_forward.1} parent=47 // pred_fallthru
          _
      $region48: #{simple_model_forward.1} parent=5 // pred_fallthru
        _
      %p289 = scmp.le.s32.totalorder 1, %s18
      %p290 = scmp.lt.s32.totalorder %s18, 3
      %p291 = pnand %p289, %p290
      %p292 = pneg %p291
      // Predicated region
      $region53: #{simple_model_forward.1} parent=5 // pred_check
        _
      $region54: #{simple_model_forward.1} parent=5 // pred_check_branch
        %294 = sbr.rel (%p291) target = $region56
      $region55: #{simple_model_forward.1} parent=5 // pred_region
        %s295 = ssub.s32 %s18, 1
        %p296 = scmp.lt.s32.totalorder %s23, 1
        %s297 = scalar_select %p296, %s23, 1
        %s298 = smul.addr %s297, 4
        %s299 = smul.addr %s298, 8
        %s300 = scalar_lea.vmem %s0, %s299
        %p301 = pneg %p44
        %p302 = pneg %p41
        %p303 = pneg %p65
        %p304 = pneg %p62
        %p305 = pneg %p86
        %p306 = pneg %p83
        %p307 = pneg %p107
        %p308 = pneg %p104
        %p309 = pneg %p128
        %p310 = pneg %p125
        %p311 = pneg %p149
        %p312 = pneg %p146
        %p313 = pneg %p170
        %p314 = pneg %p167
        %p315 = pneg %p191
        %p316 = pneg %p188
        %p317 = pneg %p212
        %p318 = pneg %p209
        %p319 = pneg %p238
        %p320 = pneg %p235
        %s321 = sand.u32 %s225, 1
        %s322 = scalar_lea.sflag [#allocation3], %s321
        %s323 = sand.u32 %s225, 1
        %s324 = scalar_lea.vmem [#allocation2], %s323
        %p325 = scmp.lt.s32.totalorder %s23, 1
        %s326 = scalar_select %p325, %s23, 1
        %s327 = smul.addr %s326, 4
        %s328 = smul.addr %s327, 8
        %s329 = scalar_lea.vmem %s0, %s328
        %v330 = vld [vmem:[%s329] sm:$0xff]
        %v331 = vld [vmem:[%s329 + $0x8] sm:$0xff]
        %v332 = vld [vmem:[%s329 + $0x10] sm:$0xff]
        %v333 = vld [vmem:[%s329 + $0x18] sm:$0xf]
        %v334 = vld [vmem:[%s2] sm:$0xff]
        %v335 = vld [vmem:[%s2 + $0x8] sm:$0xff]
        %v336 = vld [vmem:[%s2 + $0x10] sm:$0xff]
        %v337 = vld [vmem:[%s2 + $0x18] sm:$0xf]
        %vm338 = vcmask 228352
        %v340 = vsel %vm338, %v334, 0
        %v343 = vsel %vm338, %v335, 0
        %v346 = vsel %vm338, %v336, 0
        %v349 = vsel %vm338, %v337, 0
        %vm351 = vcmask 1043456
        %v353 = vsel %vm351, %v333, 0
        %355 = vmatpush.msra.mxu0 0.0
        %356 = vmatpush.msra.mxu0 0.0
        %357 = vmatpush.msra.mxu0 0.0
        %358 = vmatpush.msra.mxu0 0.0
        %359 = vmatpush.msra.mxu0 0.0
        %360 = vmatpush.msra.mxu0 0.0
        %361 = vmatpush.msra.mxu0 0.0
        %362 = vmatpush.msra.mxu0 0.0
        %363 = vmatpush.msra.mxu0 0.0
        %364 = vmatpush.msra.mxu0 0.0
        %365 = vmatpush.msra.mxu0 0.0
        %366 = vmatpush.msra.mxu0 0.0
        %367 = vmatpush.msra.mxu0 %v353
        %368 = vmatpush.msra.mxu0 %v332
        %369 = vmatpush.msra.mxu0 %v331
        %370 = vmatpush.msra.mxu0 %v330
        %371 = vmatmul.f32.gmra.mxu0 %v340
        %v372 = vpop.f32.mrf.mxu0
        %v373 = vadd.f32 0.0, %v372
        %374 = vmatmul.f32.gmra.mxu0 %v343
        %v375 = vpop.f32.mrf.mxu0
        %v376 = vadd.f32 0.0, %v375
        %377 = vmatmul.f32.gmra.mxu0 %v346
        %v378 = vpop.f32.mrf.mxu0
        %v379 = vadd.f32 0.0, %v378
        %380 = vmatmul.f32.gmra.mxu0 %v349
        %v381 = vpop.f32.mrf.mxu0
        %v382 = vadd.f32 0.0, %v381
        %383 = vdwg.mxu0
        %v384 = vld [vmem:[%s1] sm:$0xff]
        %v385 = vld [vmem:[%s1 + $0x8] sm:$0xff]
        %v386 = vld [vmem:[%s1 + $0x10] sm:$0xff]
        %v387 = vld [vmem:[%s1 + $0x18] sm:$0xff]
        %v388 = vld [vmem:[%s1 + $0x20] sm:$0xff]
        %v389 = vld [vmem:[%s1 + $0x28] sm:$0xff]
        %v390 = vld [vmem:[%s1 + $0x30] sm:$0xf]
        %v391 = vld [vmem:[%s1 + $0x38] sm:$0xf]
        %s392 = scalar_lea.vmem %s2, 32
        %v393 = vld [vmem:[%s392] sm:$0xff]
        %v394 = vld [vmem:[%s392 + $0x8] sm:$0xff]
        %v395 = vld [vmem:[%s392 + $0x10] sm:$0xff]
        %v396 = vld [vmem:[%s392 + $0x18] sm:$0xf]
        %v398 = vsel %vm338, %v393, 0
        %v401 = vsel %vm338, %v394, 0
        %v404 = vsel %vm338, %v395, 0
        %v407 = vsel %vm338, %v396, 0
        %409 = vmatpush.msra.mxu0 0.0
        %410 = vmatpush.msra.mxu0 0.0
        %411 = vmatpush.msra.mxu0 0.0
        %412 = vmatpush.msra.mxu0 0.0
        %413 = vmatpush.msra.mxu0 0.0
        %414 = vmatpush.msra.mxu0 0.0
        %415 = vmatpush.msra.mxu0 0.0
        %416 = vmatpush.msra.mxu0 0.0
        %417 = vmatpush.msra.mxu0 0.0
        %418 = vmatpush.msra.mxu0 0.0
        %419 = vmatpush.msra.mxu0 0.0
        %420 = vmatpush.msra.mxu0 0.0
        %421 = vmatpush.msra.mxu0 %v353
        %422 = vmatpush.msra.mxu0 %v332
        %423 = vmatpush.msra.mxu0 %v331
        %424 = vmatpush.msra.mxu0 %v330
        %425 = vmatmul.f32.gmra.mxu0 %v398
        %v426 = vpop.f32.mrf.mxu0
        %v427 = vadd.f32 0.0, %v426
        %428 = vmatmul.f32.gmra.mxu0 %v401
        %v429 = vpop.f32.mrf.mxu0
        %v430 = vadd.f32 0.0, %v429
        %431 = vmatmul.f32.gmra.mxu0 %v404
        %v432 = vpop.f32.mrf.mxu0
        %v433 = vadd.f32 0.0, %v432
        %434 = vmatmul.f32.gmra.mxu0 %v407
        %v435 = vpop.f32.mrf.mxu0
        %v436 = vadd.f32 0.0, %v435
        %437 = vdwg.mxu0
        %s438 = scalar_lea.vmem %s1, 64
        %v439 = vld [vmem:[%s438] sm:$0xff]
        %v440 = vld [vmem:[%s438 + $0x8] sm:$0xff]
        %v441 = vld [vmem:[%s438 + $0x10] sm:$0xff]
        %v442 = vld [vmem:[%s438 + $0x18] sm:$0xff]
        %v443 = vld [vmem:[%s438 + $0x20] sm:$0xff]
        %v444 = vld [vmem:[%s438 + $0x28] sm:$0xff]
        %v445 = vld [vmem:[%s438 + $0x30] sm:$0xf]
        %v446 = vld [vmem:[%s438 + $0x38] sm:$0xf]
        %v448 = vsel %vm338, %v427, 0
        %v451 = vsel %vm338, %v430, 0
        %v454 = vsel %vm338, %v433, 0
        %v457 = vsel %vm338, %v436, 0
        %v460 = vsel %vm351, %v445, 0
        %v463 = vsel %vm351, %v446, 0
        %465 = vmatpush.msra.mxu0 0.0
        %466 = vmatpush.msra.mxu0 0.0
        %467 = vmatpush.msra.mxu0 0.0
        %468 = vmatpush.msra.mxu0 0.0
        %469 = vmatpush.msra.mxu0 0.0
        %470 = vmatpush.msra.mxu0 0.0
        %471 = vmatpush.msra.mxu0 0.0
        %472 = vmatpush.msra.mxu0 0.0
        %473 = vmatpush.msra.mxu0 0.0
        %474 = vmatpush.msra.mxu0 0.0
        %475 = vmatpush.msra.mxu0 0.0
        %476 = vmatpush.msra.mxu0 0.0
        %477 = vmatpush.msra.mxu0 %v460
        %478 = vmatpush.msra.mxu0 %v443
        %479 = vmatpush.msra.mxu0 %v441
        %480 = vmatpush.msra.mxu0 %v439
        %481 = vmatmul.f32.gmra.mxu0 %v448
        %v482 = vpop.f32.mrf.mxu0
        %v483 = vadd.f32 0.0, %v482
        %484 = vmatmul.f32.gmra.mxu0 %v451
        %v485 = vpop.f32.mrf.mxu0
        %v486 = vadd.f32 0.0, %v485
        %487 = vmatmul.f32.gmra.mxu0 %v454
        %v488 = vpop.f32.mrf.mxu0
        %v489 = vadd.f32 0.0, %v488
        %490 = vmatmul.f32.gmra.mxu0 %v457
        %v491 = vpop.f32.mrf.mxu0
        %v492 = vadd.f32 0.0, %v491
        %493 = vdwg.mxu0
        %494 = vmatpush.msra.mxu0 0.0
        %495 = vmatpush.msra.mxu0 0.0
        %496 = vmatpush.msra.mxu0 0.0
        %497 = vmatpush.msra.mxu0 0.0
        %498 = vmatpush.msra.mxu0 0.0
        %499 = vmatpush.msra.mxu0 0.0
        %500 = vmatpush.msra.mxu0 0.0
        %501 = vmatpush.msra.mxu0 0.0
        %502 = vmatpush.msra.mxu0 0.0
        %503 = vmatpush.msra.mxu0 0.0
        %504 = vmatpush.msra.mxu0 0.0
        %505 = vmatpush.msra.mxu0 0.0
        %506 = vmatpush.msra.mxu0 %v463
        %507 = vmatpush.msra.mxu0 %v444
        %508 = vmatpush.msra.mxu0 %v442
        %509 = vmatpush.msra.mxu0 %v440
        %510 = vmatmul.f32.gmra.mxu0 %v448
        %v511 = vpop.f32.mrf.mxu0
        %v512 = vadd.f32 0.0, %v511
        %513 = vmatmul.f32.gmra.mxu0 %v451
        %v514 = vpop.f32.mrf.mxu0
        %v515 = vadd.f32 0.0, %v514
        %516 = vmatmul.f32.gmra.mxu0 %v454
        %v517 = vpop.f32.mrf.mxu0
        %v518 = vadd.f32 0.0, %v517
        %519 = vmatmul.f32.gmra.mxu0 %v457
        %v520 = vpop.f32.mrf.mxu0
        %v521 = vadd.f32 0.0, %v520
        %522 = vdwg.mxu0
        %v524 = vsel %vm338, %v373, 0
        %v527 = vsel %vm338, %v376, 0
        %v530 = vsel %vm338, %v379, 0
        %v533 = vsel %vm338, %v382, 0
        %v536 = vsel %vm351, %v390, 0
        %v539 = vsel %vm351, %v391, 0
        %541 = vmatpush.msra.mxu0 0.0
        %542 = vmatpush.msra.mxu0 0.0
        %543 = vmatpush.msra.mxu0 0.0
        %544 = vmatpush.msra.mxu0 0.0
        %545 = vmatpush.msra.mxu0 0.0
        %546 = vmatpush.msra.mxu0 0.0
        %547 = vmatpush.msra.mxu0 0.0
        %548 = vmatpush.msra.mxu0 0.0
        %549 = vmatpush.msra.mxu0 0.0
        %550 = vmatpush.msra.mxu0 0.0
        %551 = vmatpush.msra.mxu0 0.0
        %552 = vmatpush.msra.mxu0 0.0
        %553 = vmatpush.msra.mxu0 %v536
        %554 = vmatpush.msra.mxu0 %v388
        %555 = vmatpush.msra.mxu0 %v386
        %556 = vmatpush.msra.mxu0 %v384
        %557 = vmatmul.f32.gmra.mxu0 %v524
        %v558 = vpop.f32.mrf.mxu0
        %v559 = vadd.f32 %v483, %v558
        %560 = vmatmul.f32.gmra.mxu0 %v527
        %v561 = vpop.f32.mrf.mxu0
        %v562 = vadd.f32 %v486, %v561
        %563 = vmatmul.f32.gmra.mxu0 %v530
        %v564 = vpop.f32.mrf.mxu0
        %v565 = vadd.f32 %v489, %v564
        %566 = vmatmul.f32.gmra.mxu0 %v533
        %v567 = vpop.f32.mrf.mxu0
        %v568 = vadd.f32 %v492, %v567
        %569 = vdwg.mxu0
        %570 = vmatpush.msra.mxu0 0.0
        %571 = vmatpush.msra.mxu0 0.0
        %572 = vmatpush.msra.mxu0 0.0
        %573 = vmatpush.msra.mxu0 0.0
        %574 = vmatpush.msra.mxu0 0.0
        %575 = vmatpush.msra.mxu0 0.0
        %576 = vmatpush.msra.mxu0 0.0
        %577 = vmatpush.msra.mxu0 0.0
        %578 = vmatpush.msra.mxu0 0.0
        %579 = vmatpush.msra.mxu0 0.0
        %580 = vmatpush.msra.mxu0 0.0
        %581 = vmatpush.msra.mxu0 0.0
        %582 = vmatpush.msra.mxu0 %v539
        %583 = vmatpush.msra.mxu0 %v389
        %584 = vmatpush.msra.mxu0 %v387
        %585 = vmatpush.msra.mxu0 %v385
        %586 = vmatmul.f32.gmra.mxu0 %v524
        %v587 = vpop.f32.mrf.mxu0
        %v588 = vadd.f32 %v512, %v587
        %589 = vmatmul.f32.gmra.mxu0 %v527
        %v590 = vpop.f32.mrf.mxu0
        %v591 = vadd.f32 %v515, %v590
        %592 = vmatmul.f32.gmra.mxu0 %v530
        %v593 = vpop.f32.mrf.mxu0
        %v594 = vadd.f32 %v518, %v593
        %595 = vmatmul.f32.gmra.mxu0 %v533
        %v596 = vpop.f32.mrf.mxu0
        %v597 = vadd.f32 %v521, %v596
        %598 = vdwg.mxu0
        %s599 = scalar_lea.vmem %s2, 64
        %v600 = vld [vmem:[%s599] sm:$0xff]
        %v601 = vld [vmem:[%s599 + $0x8] sm:$0xff]
        %v602 = vld [vmem:[%s599 + $0x10] sm:$0xff]
        %v603 = vld [vmem:[%s599 + $0x18] sm:$0xf]
        %v605 = vsel %vm338, %v600, 0
        %v608 = vsel %vm338, %v601, 0
        %v611 = vsel %vm338, %v602, 0
        %v614 = vsel %vm338, %v603, 0
        %616 = vmatpush.msra.mxu0 0.0
        %617 = vmatpush.msra.mxu0 0.0
        %618 = vmatpush.msra.mxu0 0.0
        %619 = vmatpush.msra.mxu0 0.0
        %620 = vmatpush.msra.mxu0 0.0
        %621 = vmatpush.msra.mxu0 0.0
        %622 = vmatpush.msra.mxu0 0.0
        %623 = vmatpush.msra.mxu0 0.0
        %624 = vmatpush.msra.mxu0 0.0
        %625 = vmatpush.msra.mxu0 0.0
        %626 = vmatpush.msra.mxu0 0.0
        %627 = vmatpush.msra.mxu0 0.0
        %628 = vmatpush.msra.mxu0 %v353
        %629 = vmatpush.msra.mxu0 %v332
        %630 = vmatpush.msra.mxu0 %v331
        %631 = vmatpush.msra.mxu0 %v330
        %632 = vmatmul.f32.gmra.mxu0 %v605
        %v633 = vpop.f32.mrf.mxu0
        %v634 = vadd.f32 0.0, %v633
        %635 = vmatmul.f32.gmra.mxu0 %v608
        %v636 = vpop.f32.mrf.mxu0
        %v637 = vadd.f32 0.0, %v636
        %638 = vmatmul.f32.gmra.mxu0 %v611
        %v639 = vpop.f32.mrf.mxu0
        %v640 = vadd.f32 0.0, %v639
        %641 = vmatmul.f32.gmra.mxu0 %v614
        %v642 = vpop.f32.mrf.mxu0
        %v643 = vadd.f32 0.0, %v642
        %644 = vdwg.mxu0
        %s645 = scalar_lea.vmem %s1, 128
        %v646 = vld [vmem:[%s645] sm:$0xff]
        %v647 = vld [vmem:[%s645 + $0x8] sm:$0xff]
        %v648 = vld [vmem:[%s645 + $0x10] sm:$0xff]
        %v649 = vld [vmem:[%s645 + $0x18] sm:$0xff]
        %v650 = vld [vmem:[%s645 + $0x20] sm:$0xff]
        %v651 = vld [vmem:[%s645 + $0x28] sm:$0xff]
        %v652 = vld [vmem:[%s645 + $0x30] sm:$0xf]
        %v653 = vld [vmem:[%s645 + $0x38] sm:$0xf]
        %v655 = vsel %vm338, %v634, 0
        %v658 = vsel %vm338, %v637, 0
        %v661 = vsel %vm338, %v640, 0
        %v664 = vsel %vm338, %v643, 0
        %v667 = vsel %vm351, %v652, 0
        %v670 = vsel %vm351, %v653, 0
        %672 = vmatpush.msra.mxu0 0.0
        %673 = vmatpush.msra.mxu0 0.0
        %674 = vmatpush.msra.mxu0 0.0
        %675 = vmatpush.msra.mxu0 0.0
        %676 = vmatpush.msra.mxu0 0.0
        %677 = vmatpush.msra.mxu0 0.0
        %678 = vmatpush.msra.mxu0 0.0
        %679 = vmatpush.msra.mxu0 0.0
        %680 = vmatpush.msra.mxu0 0.0
        %681 = vmatpush.msra.mxu0 0.0
        %682 = vmatpush.msra.mxu0 0.0
        %683 = vmatpush.msra.mxu0 0.0
        %684 = vmatpush.msra.mxu0 %v667
        %685 = vmatpush.msra.mxu0 %v650
        %686 = vmatpush.msra.mxu0 %v648
        %687 = vmatpush.msra.mxu0 %v646
        %688 = vmatmul.f32.gmra.mxu0 %v655
        %v689 = vpop.f32.mrf.mxu0
        %v690 = vadd.f32 0.0, %v689
        %691 = vmatmul.f32.gmra.mxu0 %v658
        %v692 = vpop.f32.mrf.mxu0
        %v693 = vadd.f32 0.0, %v692
        %694 = vmatmul.f32.gmra.mxu0 %v661
        %v695 = vpop.f32.mrf.mxu0
        %v696 = vadd.f32 0.0, %v695
        %697 = vmatmul.f32.gmra.mxu0 %v664
        %v698 = vpop.f32.mrf.mxu0
        %v699 = vadd.f32 0.0, %v698
        %700 = vdwg.mxu0
        %701 = vmatpush.msra.mxu0 0.0
        %702 = vmatpush.msra.mxu0 0.0
        %703 = vmatpush.msra.mxu0 0.0
        %704 = vmatpush.msra.mxu0 0.0
        %705 = vmatpush.msra.mxu0 0.0
        %706 = vmatpush.msra.mxu0 0.0
        %707 = vmatpush.msra.mxu0 0.0
        %708 = vmatpush.msra.mxu0 0.0
        %709 = vmatpush.msra.mxu0 0.0
        %710 = vmatpush.msra.mxu0 0.0
        %711 = vmatpush.msra.mxu0 0.0
        %712 = vmatpush.msra.mxu0 0.0
        %713 = vmatpush.msra.mxu0 %v670
        %714 = vmatpush.msra.mxu0 %v651
        %715 = vmatpush.msra.mxu0 %v649
        %716 = vmatpush.msra.mxu0 %v647
        %717 = vmatmul.f32.gmra.mxu0 %v655
        %v718 = vpop.f32.mrf.mxu0
        %v719 = vadd.f32 0.0, %v718
        %720 = vmatmul.f32.gmra.mxu0 %v658
        %v721 = vpop.f32.mrf.mxu0
        %v722 = vadd.f32 0.0, %v721
        %723 = vmatmul.f32.gmra.mxu0 %v661
        %v724 = vpop.f32.mrf.mxu0
        %v725 = vadd.f32 0.0, %v724
        %726 = vmatmul.f32.gmra.mxu0 %v664
        %v727 = vpop.f32.mrf.mxu0
        %v728 = vadd.f32 0.0, %v727
        %729 = vdwg.mxu0
        %v730 = vadd.f32 %v559, %v690
        %v731 = vadd.f32 %v588, %v719
        %v732 = vadd.f32 %v562, %v693
        %v733 = vadd.f32 %v591, %v722
        %v734 = vadd.f32 %v565, %v696
        %v735 = vadd.f32 %v594, %v725
        %v736 = vadd.f32 %v568, %v699
        %v737 = vadd.f32 %v597, %v728
        %v738 = vld [vmem:[%s4] sm:$0xff]
        %v739 = vld [vmem:[%s4 + $0x8] sm:$0x3f]
        %v741 = vsel %vm338, %v738, 0
        %v744 = vsel %vm338, %v739, 0
        %v747 = vsel %vm351, %v736, 0
        %v750 = vsel %vm351, %v737, 0
        %752 = vmatpush.msra.mxu0 0.0
        %753 = vmatpush.msra.mxu0 0.0
        %754 = vmatpush.msra.mxu0 0.0
        %755 = vmatpush.msra.mxu0 0.0
        %756 = vmatpush.msra.mxu0 0.0
        %757 = vmatpush.msra.mxu0 0.0
        %758 = vmatpush.msra.mxu0 0.0
        %759 = vmatpush.msra.mxu0 0.0
        %760 = vmatpush.msra.mxu0 0.0
        %761 = vmatpush.msra.mxu0 0.0
        %762 = vmatpush.msra.mxu0 0.0
        %763 = vmatpush.msra.mxu0 0.0
        %764 = vmatpush.msra.mxu0 %v747
        %765 = vmatpush.msra.mxu0 %v734
        %766 = vmatpush.msra.mxu0 %v732
        %767 = vmatpush.msra.mxu0 %v730
        %768 = vmatmul.f32.gmra.mxu0 %v741
        %v769 = vpop.f32.mrf.mxu0
        %v770 = vadd.f32 0.0, %v769
        %771 = vmatmul.f32.gmra.mxu0 %v744
        %v772 = vpop.f32.mrf.mxu0
        %v773 = vadd.f32 0.0, %v772
        %774 = vdwg.mxu0
        %775 = vmatpush.msra.mxu0 0.0
        %776 = vmatpush.msra.mxu0 0.0
        %777 = vmatpush.msra.mxu0 0.0
        %778 = vmatpush.msra.mxu0 0.0
        %779 = vmatpush.msra.mxu0 0.0
        %780 = vmatpush.msra.mxu0 0.0
        %781 = vmatpush.msra.mxu0 0.0
        %782 = vmatpush.msra.mxu0 0.0
        %783 = vmatpush.msra.mxu0 0.0
        %784 = vmatpush.msra.mxu0 0.0
        %785 = vmatpush.msra.mxu0 0.0
        %786 = vmatpush.msra.mxu0 0.0
        %787 = vmatpush.msra.mxu0 %v750
        %788 = vmatpush.msra.mxu0 %v735
        %789 = vmatpush.msra.mxu0 %v733
        %790 = vmatpush.msra.mxu0 %v731
        %791 = vmatmul.f32.gmra.mxu0 %v741
        %v792 = vpop.f32.mrf.mxu0
        %v793 = vadd.f32 0.0, %v792
        %794 = vmatmul.f32.gmra.mxu0 %v744
        %v795 = vpop.f32.mrf.mxu0
        %v796 = vadd.f32 0.0, %v795
        %797 = vdwg.mxu0
        %v798 = vld [vmem:[%s3] sm:$0xff]
        %v799 = vld [vmem:[%s3 + $0x8] sm:$0xff]
        %v800 = vld [vmem:[%s3 + $0x10] sm:$0xff]
        %v801 = vld [vmem:[%s3 + $0x18] sm:$0xff]
        %v802 = vld [vmem:[%s3 + $0x20] sm:$0xff]
        %v803 = vld [vmem:[%s3 + $0x28] sm:$0xff]
        %v804 = vld [vmem:[%s3 + $0x30] sm:$0xff]
        %v805 = vld [vmem:[%s3 + $0x38] sm:$0xff]
        %v806 = vld [vmem:[%s3 + $0x40] sm:$0xff]
        %v807 = vld [vmem:[%s3 + $0x48] sm:$0xff]
        %v808 = vld [vmem:[%s3 + $0x50] sm:$0xff]
        %v809 = vld [vmem:[%s3 + $0x58] sm:$0xff]
        %v810 = vld [vmem:[%s3 + $0x60] sm:$0xff]
        %v811 = vld [vmem:[%s3 + $0x68] sm:$0xff]
        %v812 = vld [vmem:[%s3 + $0x70] sm:$0xff]
        %v813 = vld [vmem:[%s3 + $0x78] sm:$0xff]
        %v814 = vld [vmem:[%s3 + $0x80] sm:$0xff]
        %v815 = vld [vmem:[%s3 + $0x88] sm:$0xff]
        %v816 = vld [vmem:[%s3 + $0x90] sm:$0xff]
        %v817 = vld [vmem:[%s3 + $0x98] sm:$0xff]
        %v818 = vld [vmem:[%s3 + $0xa0] sm:$0xff]
        %v819 = vld [vmem:[%s3 + $0xa8] sm:$0xff]
        %v820 = vld [vmem:[%s3 + $0xb0] sm:$0xff]
        %v821 = vld [vmem:[%s3 + $0xb8] sm:$0xff]
        %v822 = vld [vmem:[%s3 + $0xc0] sm:$0xff]
        %v823 = vld [vmem:[%s3 + $0xc8] sm:$0xff]
        %v824 = vld [vmem:[%s3 + $0xd0] sm:$0xff]
        %v825 = vld [vmem:[%s3 + $0xd8] sm:$0xff]
        %v826 = vld [vmem:[%s3 + $0xe0] sm:$0xff]
        %v827 = vld [vmem:[%s3 + $0xe8] sm:$0xff]
        %v828 = vld [vmem:[%s3 + $0xf0] sm:$0xff]
        %v829 = vld [vmem:[%s3 + $0xf8] sm:$0xff]
        %v830 = vld [vmem:[%s3 + $0x100] sm:$0xff]
        %v831 = vld [vmem:[%s3 + $0x108] sm:$0xff]
        %v832 = vld [vmem:[%s3 + $0x110] sm:$0xff]
        %v833 = vld [vmem:[%s3 + $0x118] sm:$0xff]
        %v834 = vld [vmem:[%s3 + $0x120] sm:$0xff]
        %v835 = vld [vmem:[%s3 + $0x128] sm:$0xff]
        %v836 = vld [vmem:[%s3 + $0x130] sm:$0xff]
        %v837 = vld [vmem:[%s3 + $0x138] sm:$0xff]
        %v838 = vld [vmem:[%s3 + $0x140] sm:$0xff]
        %v839 = vld [vmem:[%s3 + $0x148] sm:$0xff]
        %v840 = vld [vmem:[%s3 + $0x150] sm:$0xff]
        %v841 = vld [vmem:[%s3 + $0x158] sm:$0xff]
        %v842 = vld [vmem:[%s3 + $0x160] sm:$0xff]
        %v843 = vld [vmem:[%s3 + $0x168] sm:$0xff]
        %v844 = vld [vmem:[%s3 + $0x170] sm:$0xff]
        %v845 = vld [vmem:[%s3 + $0x178] sm:$0xff]
        %v846 = vld [vmem:[%s3 + $0x180] sm:$0xff]
        %v847 = vld [vmem:[%s3 + $0x188] sm:$0xff]
        %v848 = vld [vmem:[%s3 + $0x190] sm:$0xff]
        %v849 = vld [vmem:[%s3 + $0x198] sm:$0xff]
        %v850 = vld [vmem:[%s3 + $0x1a0] sm:$0xff]
        %v851 = vld [vmem:[%s3 + $0x1a8] sm:$0xff]
        %v852 = vld [vmem:[%s3 + $0x1b0] sm:$0xff]
        %v853 = vld [vmem:[%s3 + $0x1b8] sm:$0xff]
        %s854 = scalar_lea.vmem %s4, 16
        %v855 = vld [vmem:[%s854] sm:$0xff]
        %v856 = vld [vmem:[%s854 + $0x8] sm:$0x3f]
        %v858 = vsel %vm338, %v855, 0
        %v861 = vsel %vm338, %v856, 0
        %863 = vmatpush.msra.mxu0 0.0
        %864 = vmatpush.msra.mxu0 0.0
        %865 = vmatpush.msra.mxu0 0.0
        %866 = vmatpush.msra.mxu0 0.0
        %867 = vmatpush.msra.mxu0 0.0
        %868 = vmatpush.msra.mxu0 0.0
        %869 = vmatpush.msra.mxu0 0.0
        %870 = vmatpush.msra.mxu0 0.0
        %871 = vmatpush.msra.mxu0 0.0
        %872 = vmatpush.msra.mxu0 0.0
        %873 = vmatpush.msra.mxu0 0.0
        %874 = vmatpush.msra.mxu0 0.0
        %875 = vmatpush.msra.mxu0 %v747
        %876 = vmatpush.msra.mxu0 %v734
        %877 = vmatpush.msra.mxu0 %v732
        %878 = vmatpush.msra.mxu0 %v730
        %879 = vmatmul.f32.gmra.mxu0 %v858
        %v880 = vpop.f32.mrf.mxu0
        %v881 = vadd.f32 0.0, %v880
        %882 = vmatmul.f32.gmra.mxu0 %v861
        %v883 = vpop.f32.mrf.mxu0
        %v884 = vadd.f32 0.0, %v883
        %885 = vdwg.mxu0
        %886 = vmatpush.msra.mxu0 0.0
        %887 = vmatpush.msra.mxu0 0.0
        %888 = vmatpush.msra.mxu0 0.0
        %889 = vmatpush.msra.mxu0 0.0
        %890 = vmatpush.msra.mxu0 0.0
        %891 = vmatpush.msra.mxu0 0.0
        %892 = vmatpush.msra.mxu0 0.0
        %893 = vmatpush.msra.mxu0 0.0
        %894 = vmatpush.msra.mxu0 0.0
        %895 = vmatpush.msra.mxu0 0.0
        %896 = vmatpush.msra.mxu0 0.0
        %897 = vmatpush.msra.mxu0 0.0
        %898 = vmatpush.msra.mxu0 %v750
        %899 = vmatpush.msra.mxu0 %v735
        %900 = vmatpush.msra.mxu0 %v733
        %901 = vmatpush.msra.mxu0 %v731
        %902 = vmatmul.f32.gmra.mxu0 %v858
        %v903 = vpop.f32.mrf.mxu0
        %v904 = vadd.f32 0.0, %v903
        %905 = vmatmul.f32.gmra.mxu0 %v861
        %v906 = vpop.f32.mrf.mxu0
        %v907 = vadd.f32 0.0, %v906
        %908 = vdwg.mxu0
        %s909 = scalar_lea.vmem %s3, 448
        %v910 = vld [vmem:[%s909] sm:$0xff]
        %v911 = vld [vmem:[%s909 + $0x8] sm:$0xff]
        %v912 = vld [vmem:[%s909 + $0x10] sm:$0xff]
        %v913 = vld [vmem:[%s909 + $0x18] sm:$0xff]
        %v914 = vld [vmem:[%s909 + $0x20] sm:$0xff]
        %v915 = vld [vmem:[%s909 + $0x28] sm:$0xff]
        %v916 = vld [vmem:[%s909 + $0x30] sm:$0xff]
        %v917 = vld [vmem:[%s909 + $0x38] sm:$0xff]
        %v918 = vld [vmem:[%s909 + $0x40] sm:$0xff]
        %v919 = vld [vmem:[%s909 + $0x48] sm:$0xff]
        %v920 = vld [vmem:[%s909 + $0x50] sm:$0xff]
        %v921 = vld [vmem:[%s909 + $0x58] sm:$0xff]
        %v922 = vld [vmem:[%s909 + $0x60] sm:$0xff]
        %v923 = vld [vmem:[%s909 + $0x68] sm:$0xff]
        %v924 = vld [vmem:[%s909 + $0x70] sm:$0xff]
        %v925 = vld [vmem:[%s909 + $0x78] sm:$0xff]
        %v926 = vld [vmem:[%s909 + $0x80] sm:$0xff]
        %v927 = vld [vmem:[%s909 + $0x88] sm:$0xff]
        %v928 = vld [vmem:[%s909 + $0x90] sm:$0xff]
        %v929 = vld [vmem:[%s909 + $0x98] sm:$0xff]
        %v930 = vld [vmem:[%s909 + $0xa0] sm:$0xff]
        %v931 = vld [vmem:[%s909 + $0xa8] sm:$0xff]
        %v932 = vld [vmem:[%s909 + $0xb0] sm:$0xff]
        %v933 = vld [vmem:[%s909 + $0xb8] sm:$0xff]
        %v934 = vld [vmem:[%s909 + $0xc0] sm:$0xff]
        %v935 = vld [vmem:[%s909 + $0xc8] sm:$0xff]
        %v936 = vld [vmem:[%s909 + $0xd0] sm:$0xff]
        %v937 = vld [vmem:[%s909 + $0xd8] sm:$0xff]
        %v938 = vld [vmem:[%s909 + $0xe0] sm:$0xff]
        %v939 = vld [vmem:[%s909 + $0xe8] sm:$0xff]
        %v940 = vld [vmem:[%s909 + $0xf0] sm:$0xff]
        %v941 = vld [vmem:[%s909 + $0xf8] sm:$0xff]
        %v942 = vld [vmem:[%s909 + $0x100] sm:$0xff]
        %v943 = vld [vmem:[%s909 + $0x108] sm:$0xff]
        %v944 = vld [vmem:[%s909 + $0x110] sm:$0xff]
        %v945 = vld [vmem:[%s909 + $0x118] sm:$0xff]
        %v946 = vld [vmem:[%s909 + $0x120] sm:$0xff]
        %v947 = vld [vmem:[%s909 + $0x128] sm:$0xff]
        %v948 = vld [vmem:[%s909 + $0x130] sm:$0xff]
        %v949 = vld [vmem:[%s909 + $0x138] sm:$0xff]
        %v950 = vld [vmem:[%s909 + $0x140] sm:$0xff]
        %v951 = vld [vmem:[%s909 + $0x148] sm:$0xff]
        %v952 = vld [vmem:[%s909 + $0x150] sm:$0xff]
        %v953 = vld [vmem:[%s909 + $0x158] sm:$0xff]
        %v954 = vld [vmem:[%s909 + $0x160] sm:$0xff]
        %v955 = vld [vmem:[%s909 + $0x168] sm:$0xff]
        %v956 = vld [vmem:[%s909 + $0x170] sm:$0xff]
        %v957 = vld [vmem:[%s909 + $0x178] sm:$0xff]
        %v958 = vld [vmem:[%s909 + $0x180] sm:$0xff]
        %v959 = vld [vmem:[%s909 + $0x188] sm:$0xff]
        %v960 = vld [vmem:[%s909 + $0x190] sm:$0xff]
        %v961 = vld [vmem:[%s909 + $0x198] sm:$0xff]
        %v962 = vld [vmem:[%s909 + $0x1a0] sm:$0xff]
        %v963 = vld [vmem:[%s909 + $0x1a8] sm:$0xff]
        %v964 = vld [vmem:[%s909 + $0x1b0] sm:$0xff]
        %v965 = vld [vmem:[%s909 + $0x1b8] sm:$0xff]
        %vm966 = vcmask 785408
        %v968 = vsel %vm966, %v904, 0
        %v971 = vsel %vm966, %v907, 0
        %973 = vmatpush.msra.mxu0 %v940
        %974 = vmatpush.msra.mxu0 %v938
        %975 = vmatpush.msra.mxu0 %v936
        %976 = vmatpush.msra.mxu0 %v934
        %977 = vmatpush.msra.mxu0 %v932
        %978 = vmatpush.msra.mxu0 %v930
        %979 = vmatpush.msra.mxu0 %v928
        %980 = vmatpush.msra.mxu0 %v926
        %981 = vmatpush.msra.mxu0 %v924
        %982 = vmatpush.msra.mxu0 %v922
        %983 = vmatpush.msra.mxu0 %v920
        %984 = vmatpush.msra.mxu0 %v918
        %985 = vmatpush.msra.mxu0 %v916
        %986 = vmatpush.msra.mxu0 %v914
        %987 = vmatpush.msra.mxu0 %v912
        %988 = vmatpush.msra.mxu0 %v910
        %989 = vmatmul.f32.gmra.mxu0 %v881
        %v990 = vpop.f32.mrf.mxu0
        %v991 = vadd.f32 0.0, %v990
        %992 = vmatmul.f32.gmra.mxu0 %v884
        %v993 = vpop.f32.mrf.mxu0
        %v994 = vadd.f32 0.0, %v993
        %995 = vdwg.mxu0
        %996 = vmatpush.msra.mxu0 0.0
        %997 = vmatpush.msra.mxu0 0.0
        %998 = vmatpush.msra.mxu0 0.0
        %999 = vmatpush.msra.mxu0 0.0
        %1000 = vmatpush.msra.mxu0 %v964
        %1001 = vmatpush.msra.mxu0 %v962
        %1002 = vmatpush.msra.mxu0 %v960
        %1003 = vmatpush.msra.mxu0 %v958
        %1004 = vmatpush.msra.mxu0 %v956
        %1005 = vmatpush.msra.mxu0 %v954
        %1006 = vmatpush.msra.mxu0 %v952
        %1007 = vmatpush.msra.mxu0 %v950
        %1008 = vmatpush.msra.mxu0 %v948
        %1009 = vmatpush.msra.mxu0 %v946
        %1010 = vmatpush.msra.mxu0 %v944
        %1011 = vmatpush.msra.mxu0 %v942
        %1012 = vmatmul.f32.gmra.mxu0 %v968
        %v1013 = vpop.f32.mrf.mxu0
        %v1014 = vadd.f32 %v991, %v1013
        %1015 = vmatmul.f32.gmra.mxu0 %v971
        %v1016 = vpop.f32.mrf.mxu0
        %v1017 = vadd.f32 %v994, %v1016
        %1018 = vdwg.mxu0
        %1019 = vmatpush.msra.mxu0 %v941
        %1020 = vmatpush.msra.mxu0 %v939
        %1021 = vmatpush.msra.mxu0 %v937
        %1022 = vmatpush.msra.mxu0 %v935
        %1023 = vmatpush.msra.mxu0 %v933
        %1024 = vmatpush.msra.mxu0 %v931
        %1025 = vmatpush.msra.mxu0 %v929
        %1026 = vmatpush.msra.mxu0 %v927
        %1027 = vmatpush.msra.mxu0 %v925
        %1028 = vmatpush.msra.mxu0 %v923
        %1029 = vmatpush.msra.mxu0 %v921
        %1030 = vmatpush.msra.mxu0 %v919
        %1031 = vmatpush.msra.mxu0 %v917
        %1032 = vmatpush.msra.mxu0 %v915
        %1033 = vmatpush.msra.mxu0 %v913
        %1034 = vmatpush.msra.mxu0 %v911
        %1035 = vmatmul.f32.gmra.mxu0 %v881
        %v1036 = vpop.f32.mrf.mxu0
        %v1037 = vadd.f32 0.0, %v1036
        %1038 = vmatmul.f32.gmra.mxu0 %v884
        %v1039 = vpop.f32.mrf.mxu0
        %v1040 = vadd.f32 0.0, %v1039
        %1041 = vdwg.mxu0
        %1042 = vmatpush.msra.mxu0 0.0
        %1043 = vmatpush.msra.mxu0 0.0
        %1044 = vmatpush.msra.mxu0 0.0
        %1045 = vmatpush.msra.mxu0 0.0
        %1046 = vmatpush.msra.mxu0 %v965
        %1047 = vmatpush.msra.mxu0 %v963
        %1048 = vmatpush.msra.mxu0 %v961
        %1049 = vmatpush.msra.mxu0 %v959
        %1050 = vmatpush.msra.mxu0 %v957
        %1051 = vmatpush.msra.mxu0 %v955
        %1052 = vmatpush.msra.mxu0 %v953
        %1053 = vmatpush.msra.mxu0 %v951
        %1054 = vmatpush.msra.mxu0 %v949
        %1055 = vmatpush.msra.mxu0 %v947
        %1056 = vmatpush.msra.mxu0 %v945
        %1057 = vmatpush.msra.mxu0 %v943
        %1058 = vmatmul.f32.gmra.mxu0 %v968
        %v1059 = vpop.f32.mrf.mxu0
        %v1060 = vadd.f32 %v1037, %v1059
        %1061 = vmatmul.f32.gmra.mxu0 %v971
        %v1062 = vpop.f32.mrf.mxu0
        %v1063 = vadd.f32 %v1040, %v1062
        %1064 = vdwg.mxu0
        %v1066 = vsel %vm966, %v793, 0
        %v1069 = vsel %vm966, %v796, 0
        %1071 = vmatpush.msra.mxu0 %v828
        %1072 = vmatpush.msra.mxu0 %v826
        %1073 = vmatpush.msra.mxu0 %v824
        %1074 = vmatpush.msra.mxu0 %v822
        %1075 = vmatpush.msra.mxu0 %v820
        %1076 = vmatpush.msra.mxu0 %v818
        %1077 = vmatpush.msra.mxu0 %v816
        %1078 = vmatpush.msra.mxu0 %v814
        %1079 = vmatpush.msra.mxu0 %v812
        %1080 = vmatpush.msra.mxu0 %v810
        %1081 = vmatpush.msra.mxu0 %v808
        %1082 = vmatpush.msra.mxu0 %v806
        %1083 = vmatpush.msra.mxu0 %v804
        %1084 = vmatpush.msra.mxu0 %v802
        %1085 = vmatpush.msra.mxu0 %v800
        %1086 = vmatpush.msra.mxu0 %v798
        %1087 = vmatmul.f32.gmra.mxu0 %v770
        %v1088 = vpop.f32.mrf.mxu0
        %v1089 = vadd.f32 %v1014, %v1088
        %1090 = vmatmul.f32.gmra.mxu0 %v773
        %v1091 = vpop.f32.mrf.mxu0
        %v1092 = vadd.f32 %v1017, %v1091
        %1093 = vdwg.mxu0
        %1094 = vmatpush.msra.mxu0 0.0
        %1095 = vmatpush.msra.mxu0 0.0
        %1096 = vmatpush.msra.mxu0 0.0
        %1097 = vmatpush.msra.mxu0 0.0
        %1098 = vmatpush.msra.mxu0 %v852
        %1099 = vmatpush.msra.mxu0 %v850
        %1100 = vmatpush.msra.mxu0 %v848
        %1101 = vmatpush.msra.mxu0 %v846
        %1102 = vmatpush.msra.mxu0 %v844
        %1103 = vmatpush.msra.mxu0 %v842
        %1104 = vmatpush.msra.mxu0 %v840
        %1105 = vmatpush.msra.mxu0 %v838
        %1106 = vmatpush.msra.mxu0 %v836
        %1107 = vmatpush.msra.mxu0 %v834
        %1108 = vmatpush.msra.mxu0 %v832
        %1109 = vmatpush.msra.mxu0 %v830
        %1110 = vmatmul.f32.gmra.mxu0 %v1066
        %v1111 = vpop.f32.mrf.mxu0
        %v1112 = vadd.f32 %v1089, %v1111
        %1113 = vmatmul.f32.gmra.mxu0 %v1069
        %v1114 = vpop.f32.mrf.mxu0
        %v1115 = vadd.f32 %v1092, %v1114
        %1116 = vdwg.mxu0
        %1117 = vmatpush.msra.mxu0 %v829
        %1118 = vmatpush.msra.mxu0 %v827
        %1119 = vmatpush.msra.mxu0 %v825
        %1120 = vmatpush.msra.mxu0 %v823
        %1121 = vmatpush.msra.mxu0 %v821
        %1122 = vmatpush.msra.mxu0 %v819
        %1123 = vmatpush.msra.mxu0 %v817
        %1124 = vmatpush.msra.mxu0 %v815
        %1125 = vmatpush.msra.mxu0 %v813
        %1126 = vmatpush.msra.mxu0 %v811
        %1127 = vmatpush.msra.mxu0 %v809
        %1128 = vmatpush.msra.mxu0 %v807
        %1129 = vmatpush.msra.mxu0 %v805
        %1130 = vmatpush.msra.mxu0 %v803
        %1131 = vmatpush.msra.mxu0 %v801
        %1132 = vmatpush.msra.mxu0 %v799
        %1133 = vmatmul.f32.gmra.mxu0 %v770
        %v1134 = vpop.f32.mrf.mxu0
        %v1135 = vadd.f32 %v1060, %v1134
        %1136 = vmatmul.f32.gmra.mxu0 %v773
        %v1137 = vpop.f32.mrf.mxu0
        %v1138 = vadd.f32 %v1063, %v1137
        %1139 = vdwg.mxu0
        %1140 = vmatpush.msra.mxu0 0.0
        %1141 = vmatpush.msra.mxu0 0.0
        %1142 = vmatpush.msra.mxu0 0.0
        %1143 = vmatpush.msra.mxu0 0.0
        %1144 = vmatpush.msra.mxu0 %v853
        %1145 = vmatpush.msra.mxu0 %v851
        %1146 = vmatpush.msra.mxu0 %v849
        %1147 = vmatpush.msra.mxu0 %v847
        %1148 = vmatpush.msra.mxu0 %v845
        %1149 = vmatpush.msra.mxu0 %v843
        %1150 = vmatpush.msra.mxu0 %v841
        %1151 = vmatpush.msra.mxu0 %v839
        %1152 = vmatpush.msra.mxu0 %v837
        %1153 = vmatpush.msra.mxu0 %v835
        %1154 = vmatpush.msra.mxu0 %v833
        %1155 = vmatpush.msra.mxu0 %v831
        %1156 = vmatmul.f32.gmra.mxu0 %v1066
        %v1157 = vpop.f32.mrf.mxu0
        %v1158 = vadd.f32 %v1135, %v1157
        %1159 = vmatmul.f32.gmra.mxu0 %v1069
        %v1160 = vpop.f32.mrf.mxu0
        %v1161 = vadd.f32 %v1138, %v1160
        %1162 = vdwg.mxu0
        %s1163 = scalar_lea.vmem %s4, 32
        %v1164 = vld [vmem:[%s1163] sm:$0xff]
        %v1165 = vld [vmem:[%s1163 + $0x8] sm:$0x3f]
        %v1167 = vsel %vm338, %v1164, 0
        %v1170 = vsel %vm338, %v1165, 0
        %1172 = vmatpush.msra.mxu0 0.0
        %1173 = vmatpush.msra.mxu0 0.0
        %1174 = vmatpush.msra.mxu0 0.0
        %1175 = vmatpush.msra.mxu0 0.0
        %1176 = vmatpush.msra.mxu0 0.0
        %1177 = vmatpush.msra.mxu0 0.0
        %1178 = vmatpush.msra.mxu0 0.0
        %1179 = vmatpush.msra.mxu0 0.0
        %1180 = vmatpush.msra.mxu0 0.0
        %1181 = vmatpush.msra.mxu0 0.0
        %1182 = vmatpush.msra.mxu0 0.0
        %1183 = vmatpush.msra.mxu0 0.0
        %1184 = vmatpush.msra.mxu0 %v747
        %1185 = vmatpush.msra.mxu0 %v734
        %1186 = vmatpush.msra.mxu0 %v732
        %1187 = vmatpush.msra.mxu0 %v730
        %1188 = vmatmul.f32.gmra.mxu0 %v1167
        %v1189 = vpop.f32.mrf.mxu0
        %v1190 = vadd.f32 0.0, %v1189
        %1191 = vmatmul.f32.gmra.mxu0 %v1170
        %v1192 = vpop.f32.mrf.mxu0
        %v1193 = vadd.f32 0.0, %v1192
        %1194 = vdwg.mxu0
        %1195 = vmatpush.msra.mxu0 0.0
        %1196 = vmatpush.msra.mxu0 0.0
        %1197 = vmatpush.msra.mxu0 0.0
        %1198 = vmatpush.msra.mxu0 0.0
        %1199 = vmatpush.msra.mxu0 0.0
        %1200 = vmatpush.msra.mxu0 0.0
        %1201 = vmatpush.msra.mxu0 0.0
        %1202 = vmatpush.msra.mxu0 0.0
        %1203 = vmatpush.msra.mxu0 0.0
        %1204 = vmatpush.msra.mxu0 0.0
        %1205 = vmatpush.msra.mxu0 0.0
        %1206 = vmatpush.msra.mxu0 0.0
        %1207 = vmatpush.msra.mxu0 %v750
        %1208 = vmatpush.msra.mxu0 %v735
        %1209 = vmatpush.msra.mxu0 %v733
        %1210 = vmatpush.msra.mxu0 %v731
        %1211 = vmatmul.f32.gmra.mxu0 %v1167
        %v1212 = vpop.f32.mrf.mxu0
        %v1213 = vadd.f32 0.0, %v1212
        %1214 = vmatmul.f32.gmra.mxu0 %v1170
        %v1215 = vpop.f32.mrf.mxu0
        %v1216 = vadd.f32 0.0, %v1215
        %1217 = vdwg.mxu0
        %s1218 = scalar_lea.vmem %s3, 896
        %v1219 = vld [vmem:[%s1218] sm:$0xff]
        %v1220 = vld [vmem:[%s1218 + $0x8] sm:$0xff]
        %v1221 = vld [vmem:[%s1218 + $0x10] sm:$0xff]
        %v1222 = vld [vmem:[%s1218 + $0x18] sm:$0xff]
        %v1223 = vld [vmem:[%s1218 + $0x20] sm:$0xff]
        %v1224 = vld [vmem:[%s1218 + $0x28] sm:$0xff]
        %v1225 = vld [vmem:[%s1218 + $0x30] sm:$0xff]
        %v1226 = vld [vmem:[%s1218 + $0x38] sm:$0xff]
        %v1227 = vld [vmem:[%s1218 + $0x40] sm:$0xff]
        %v1228 = vld [vmem:[%s1218 + $0x48] sm:$0xff]
        %v1229 = vld [vmem:[%s1218 + $0x50] sm:$0xff]
        %v1230 = vld [vmem:[%s1218 + $0x58] sm:$0xff]
        %v1231 = vld [vmem:[%s1218 + $0x60] sm:$0xff]
        %v1232 = vld [vmem:[%s1218 + $0x68] sm:$0xff]
        %v1233 = vld [vmem:[%s1218 + $0x70] sm:$0xff]
        %v1234 = vld [vmem:[%s1218 + $0x78] sm:$0xff]
        %v1235 = vld [vmem:[%s1218 + $0x80] sm:$0xff]
        %v1236 = vld [vmem:[%s1218 + $0x88] sm:$0xff]
        %v1237 = vld [vmem:[%s1218 + $0x90] sm:$0xff]
        %v1238 = vld [vmem:[%s1218 + $0x98] sm:$0xff]
        %v1239 = vld [vmem:[%s1218 + $0xa0] sm:$0xff]
        %v1240 = vld [vmem:[%s1218 + $0xa8] sm:$0xff]
        %v1241 = vld [vmem:[%s1218 + $0xb0] sm:$0xff]
        %v1242 = vld [vmem:[%s1218 + $0xb8] sm:$0xff]
        %v1243 = vld [vmem:[%s1218 + $0xc0] sm:$0xff]
        %v1244 = vld [vmem:[%s1218 + $0xc8] sm:$0xff]
        %v1245 = vld [vmem:[%s1218 + $0xd0] sm:$0xff]
        %v1246 = vld [vmem:[%s1218 + $0xd8] sm:$0xff]
        %v1247 = vld [vmem:[%s1218 + $0xe0] sm:$0xff]
        %v1248 = vld [vmem:[%s1218 + $0xe8] sm:$0xff]
        %v1249 = vld [vmem:[%s1218 + $0xf0] sm:$0xff]
        %v1250 = vld [vmem:[%s1218 + $0xf8] sm:$0xff]
        %v1251 = vld [vmem:[%s1218 + $0x100] sm:$0xff]
        %v1252 = vld [vmem:[%s1218 + $0x108] sm:$0xff]
        %v1253 = vld [vmem:[%s1218 + $0x110] sm:$0xff]
        %v1254 = vld [vmem:[%s1218 + $0x118] sm:$0xff]
        %v1255 = vld [vmem:[%s1218 + $0x120] sm:$0xff]
        %v1256 = vld [vmem:[%s1218 + $0x128] sm:$0xff]
        %v1257 = vld [vmem:[%s1218 + $0x130] sm:$0xff]
        %v1258 = vld [vmem:[%s1218 + $0x138] sm:$0xff]
        %v1259 = vld [vmem:[%s1218 + $0x140] sm:$0xff]
        %v1260 = vld [vmem:[%s1218 + $0x148] sm:$0xff]
        %v1261 = vld [vmem:[%s1218 + $0x150] sm:$0xff]
        %v1262 = vld [vmem:[%s1218 + $0x158] sm:$0xff]
        %v1263 = vld [vmem:[%s1218 + $0x160] sm:$0xff]
        %v1264 = vld [vmem:[%s1218 + $0x168] sm:$0xff]
        %v1265 = vld [vmem:[%s1218 + $0x170] sm:$0xff]
        %v1266 = vld [vmem:[%s1218 + $0x178] sm:$0xff]
        %v1267 = vld [vmem:[%s1218 + $0x180] sm:$0xff]
        %v1268 = vld [vmem:[%s1218 + $0x188] sm:$0xff]
        %v1269 = vld [vmem:[%s1218 + $0x190] sm:$0xff]
        %v1270 = vld [vmem:[%s1218 + $0x198] sm:$0xff]
        %v1271 = vld [vmem:[%s1218 + $0x1a0] sm:$0xff]
        %v1272 = vld [vmem:[%s1218 + $0x1a8] sm:$0xff]
        %v1273 = vld [vmem:[%s1218 + $0x1b0] sm:$0xff]
        %v1274 = vld [vmem:[%s1218 + $0x1b8] sm:$0xff]
        %v1276 = vsel %vm966, %v1213, 0
        %v1279 = vsel %vm966, %v1216, 0
        %1281 = vmatpush.msra.mxu0 %v1249
        %1282 = vmatpush.msra.mxu0 %v1247
        %1283 = vmatpush.msra.mxu0 %v1245
        %1284 = vmatpush.msra.mxu0 %v1243
        %1285 = vmatpush.msra.mxu0 %v1241
        %1286 = vmatpush.msra.mxu0 %v1239
        %1287 = vmatpush.msra.mxu0 %v1237
        %1288 = vmatpush.msra.mxu0 %v1235
        %1289 = vmatpush.msra.mxu0 %v1233
        %1290 = vmatpush.msra.mxu0 %v1231
        %1291 = vmatpush.msra.mxu0 %v1229
        %1292 = vmatpush.msra.mxu0 %v1227
        %1293 = vmatpush.msra.mxu0 %v1225
        %1294 = vmatpush.msra.mxu0 %v1223
        %1295 = vmatpush.msra.mxu0 %v1221
        %1296 = vmatpush.msra.mxu0 %v1219
        %1297 = vmatmul.f32.gmra.mxu0 %v1190
        %v1298 = vpop.f32.mrf.mxu0
        %v1299 = vadd.f32 0.0, %v1298
        %1300 = vmatmul.f32.gmra.mxu0 %v1193
        %v1301 = vpop.f32.mrf.mxu0
        %v1302 = vadd.f32 0.0, %v1301
        %1303 = vdwg.mxu0
        %1304 = vmatpush.msra.mxu0 0.0
        %1305 = vmatpush.msra.mxu0 0.0
        %1306 = vmatpush.msra.mxu0 0.0
        %1307 = vmatpush.msra.mxu0 0.0
        %1308 = vmatpush.msra.mxu0 %v1273
        %1309 = vmatpush.msra.mxu0 %v1271
        %1310 = vmatpush.msra.mxu0 %v1269
        %1311 = vmatpush.msra.mxu0 %v1267
        %1312 = vmatpush.msra.mxu0 %v1265
        %1313 = vmatpush.msra.mxu0 %v1263
        %1314 = vmatpush.msra.mxu0 %v1261
        %1315 = vmatpush.msra.mxu0 %v1259
        %1316 = vmatpush.msra.mxu0 %v1257
        %1317 = vmatpush.msra.mxu0 %v1255
        %1318 = vmatpush.msra.mxu0 %v1253
        %1319 = vmatpush.msra.mxu0 %v1251
        %1320 = vmatmul.f32.gmra.mxu0 %v1276
        %v1321 = vpop.f32.mrf.mxu0
        %v1322 = vadd.f32 %v1299, %v1321
        %1323 = vmatmul.f32.gmra.mxu0 %v1279
        %v1324 = vpop.f32.mrf.mxu0
        %v1325 = vadd.f32 %v1302, %v1324
        %1326 = vdwg.mxu0
        %1327 = vmatpush.msra.mxu0 %v1250
        %1328 = vmatpush.msra.mxu0 %v1248
        %1329 = vmatpush.msra.mxu0 %v1246
        %1330 = vmatpush.msra.mxu0 %v1244
        %1331 = vmatpush.msra.mxu0 %v1242
        %1332 = vmatpush.msra.mxu0 %v1240
        %1333 = vmatpush.msra.mxu0 %v1238
        %1334 = vmatpush.msra.mxu0 %v1236
        %1335 = vmatpush.msra.mxu0 %v1234
        %1336 = vmatpush.msra.mxu0 %v1232
        %1337 = vmatpush.msra.mxu0 %v1230
        %1338 = vmatpush.msra.mxu0 %v1228
        %1339 = vmatpush.msra.mxu0 %v1226
        %1340 = vmatpush.msra.mxu0 %v1224
        %1341 = vmatpush.msra.mxu0 %v1222
        %1342 = vmatpush.msra.mxu0 %v1220
        %1343 = vmatmul.f32.gmra.mxu0 %v1190
        %v1344 = vpop.f32.mrf.mxu0
        %v1345 = vadd.f32 0.0, %v1344
        %1346 = vmatmul.f32.gmra.mxu0 %v1193
        %v1347 = vpop.f32.mrf.mxu0
        %v1348 = vadd.f32 0.0, %v1347
        %1349 = vdwg.mxu0
        %1350 = vmatpush.msra.mxu0 0.0
        %1351 = vmatpush.msra.mxu0 0.0
        %1352 = vmatpush.msra.mxu0 0.0
        %1353 = vmatpush.msra.mxu0 0.0
        %1354 = vmatpush.msra.mxu0 %v1274
        %1355 = vmatpush.msra.mxu0 %v1272
        %1356 = vmatpush.msra.mxu0 %v1270
        %1357 = vmatpush.msra.mxu0 %v1268
        %1358 = vmatpush.msra.mxu0 %v1266
        %1359 = vmatpush.msra.mxu0 %v1264
        %1360 = vmatpush.msra.mxu0 %v1262
        %1361 = vmatpush.msra.mxu0 %v1260
        %1362 = vmatpush.msra.mxu0 %v1258
        %1363 = vmatpush.msra.mxu0 %v1256
        %1364 = vmatpush.msra.mxu0 %v1254
        %1365 = vmatpush.msra.mxu0 %v1252
        %1366 = vmatmul.f32.gmra.mxu0 %v1276
        %v1367 = vpop.f32.mrf.mxu0
        %v1368 = vadd.f32 %v1345, %v1367
        %1369 = vmatmul.f32.gmra.mxu0 %v1279
        %v1370 = vpop.f32.mrf.mxu0
        %v1371 = vadd.f32 %v1348, %v1370
        %1372 = vdwg.mxu0
        %v1373 = vadd.f32 %v1112, %v1322
        %v1374 = vadd.f32 %v1158, %v1368
        %v1375 = vadd.f32 %v1115, %v1325
        %v1376 = vadd.f32 %v1161, %v1371
        %v1377 = vmax.f32 %v1373, 0.0
        %v1378 = vmax.f32 %v1374, 0.0
        %v1379 = vmax.f32 %v1375, 0.0
        %v1380 = vmax.f32 %v1376, 0.0
        %v1381 = vld [vmem:[%s6] sm:$0x7f]
        %vm1382 = vcmask 113664
        %v1384 = vsel %vm1382, %v1381, 0
        %vm1386 = vcmask 1045504
        %v1388 = vsel %vm1386, %v1379, 0
        %v1391 = vsel %vm1386, %v1380, 0
        %1393 = vmatpush.msra.mxu0 0.0
        %1394 = vmatpush.msra.mxu0 0.0
        %1395 = vmatpush.msra.mxu0 0.0
        %1396 = vmatpush.msra.mxu0 0.0
        %1397 = vmatpush.msra.mxu0 0.0
        %1398 = vmatpush.msra.mxu0 0.0
        %1399 = vmatpush.msra.mxu0 0.0
        %1400 = vmatpush.msra.mxu0 0.0
        %1401 = vmatpush.msra.mxu0 0.0
        %1402 = vmatpush.msra.mxu0 0.0
        %1403 = vmatpush.msra.mxu0 0.0
        %1404 = vmatpush.msra.mxu0 0.0
        %1405 = vmatpush.msra.mxu0 0.0
        %1406 = vmatpush.msra.mxu0 0.0
        %1407 = vmatpush.msra.mxu0 %v1388
        %1408 = vmatpush.msra.mxu0 %v1377
        %1409 = vmatmul.f32.gmra.mxu0 %v1384
        %v1410 = vpop.f32.mrf.mxu0
        %v1411 = vadd.f32 0.0, %v1410
        %1412 = vdwg.mxu0
        %1413 = vmatpush.msra.mxu0 0.0
        %1414 = vmatpush.msra.mxu0 0.0
        %1415 = vmatpush.msra.mxu0 0.0
        %1416 = vmatpush.msra.mxu0 0.0
        %1417 = vmatpush.msra.mxu0 0.0
        %1418 = vmatpush.msra.mxu0 0.0
        %1419 = vmatpush.msra.mxu0 0.0
        %1420 = vmatpush.msra.mxu0 0.0
        %1421 = vmatpush.msra.mxu0 0.0
        %1422 = vmatpush.msra.mxu0 0.0
        %1423 = vmatpush.msra.mxu0 0.0
        %1424 = vmatpush.msra.mxu0 0.0
        %1425 = vmatpush.msra.mxu0 0.0
        %1426 = vmatpush.msra.mxu0 0.0
        %1427 = vmatpush.msra.mxu0 %v1391
        %1428 = vmatpush.msra.mxu0 %v1378
        %1429 = vmatmul.f32.gmra.mxu0 %v1384
        %v1430 = vpop.f32.mrf.mxu0
        %v1431 = vadd.f32 0.0, %v1430
        %1432 = vdwg.mxu0
        %v1433 = vld [vmem:[%s5] sm:$0xff]
        %v1434 = vld [vmem:[%s5 + $0x8] sm:$0xff]
        %v1435 = vld [vmem:[%s5 + $0x10] sm:$0xff]
        %v1436 = vld [vmem:[%s5 + $0x18] sm:$0xff]
        %v1437 = vld [vmem:[%s5 + $0x20] sm:$0xff]
        %v1438 = vld [vmem:[%s5 + $0x28] sm:$0xff]
        %v1439 = vld [vmem:[%s5 + $0x30] sm:$0xff]
        %v1440 = vld [vmem:[%s5 + $0x38] sm:$0xff]
        %v1441 = vld [vmem:[%s5 + $0x40] sm:$0xff]
        %v1442 = vld [vmem:[%s5 + $0x48] sm:$0xff]
        %v1443 = vld [vmem:[%s5 + $0x50] sm:$0xff]
        %v1444 = vld [vmem:[%s5 + $0x58] sm:$0xff]
        %v1445 = vld [vmem:[%s5 + $0x60] sm:$0xff]
        %v1446 = vld [vmem:[%s5 + $0x68] sm:$0xff]
        %v1447 = vld [vmem:[%s5 + $0x70] sm:$0xff]
        %v1448 = vld [vmem:[%s5 + $0x78] sm:$0xff]
        %v1449 = vld [vmem:[%s5 + $0x80] sm:$0xff]
        %v1450 = vld [vmem:[%s5 + $0x88] sm:$0xff]
        %v1451 = vld [vmem:[%s5 + $0x90] sm:$0xff]
        %v1452 = vld [vmem:[%s5 + $0x98] sm:$0xff]
        %v1453 = vld [vmem:[%s5 + $0xa0] sm:$0xff]
        %v1454 = vld [vmem:[%s5 + $0xa8] sm:$0xff]
        %v1455 = vld [vmem:[%s5 + $0xb0] sm:$0xff]
        %v1456 = vld [vmem:[%s5 + $0xb8] sm:$0xff]
        %v1457 = vld [vmem:[%s5 + $0xc0] sm:$0xff]
        %v1458 = vld [vmem:[%s5 + $0xc8] sm:$0xff]
        %v1459 = vld [vmem:[%s5 + $0xd0] sm:$0xff]
        %v1460 = vld [vmem:[%s5 + $0xd8] sm:$0xff]
        %v1461 = vld [vmem:[%s5 + $0xe0] sm:$0xff]
        %v1462 = vld [vmem:[%s5 + $0xe8] sm:$0xff]
        %v1463 = vld [vmem:[%s5 + $0xf0] sm:$0xff]
        %v1464 = vld [vmem:[%s5 + $0xf8] sm:$0xff]
        %v1465 = vld [vmem:[%s5 + $0x100] sm:$0xff]
        %v1466 = vld [vmem:[%s5 + $0x108] sm:$0xff]
        %v1467 = vld [vmem:[%s5 + $0x110] sm:$0xff]
        %v1468 = vld [vmem:[%s5 + $0x118] sm:$0xff]
        %v1469 = vld [vmem:[%s5 + $0x120] sm:$0xff]
        %v1470 = vld [vmem:[%s5 + $0x128] sm:$0xff]
        %v1471 = vld [vmem:[%s5 + $0x130] sm:$0xff]
        %v1472 = vld [vmem:[%s5 + $0x138] sm:$0xff]
        %v1473 = vld [vmem:[%s5 + $0x140] sm:$0xff]
        %v1474 = vld [vmem:[%s5 + $0x148] sm:$0xff]
        %v1475 = vld [vmem:[%s5 + $0x150] sm:$0xff]
        %v1476 = vld [vmem:[%s5 + $0x158] sm:$0xff]
        %v1477 = vld [vmem:[%s5 + $0x160] sm:$0xff]
        %v1478 = vld [vmem:[%s5 + $0x168] sm:$0xff]
        %v1479 = vld [vmem:[%s5 + $0x170] sm:$0xff]
        %v1480 = vld [vmem:[%s5 + $0x178] sm:$0xff]
        %v1481 = vld [vmem:[%s5 + $0x180] sm:$0xff]
        %v1482 = vld [vmem:[%s5 + $0x188] sm:$0xff]
        %v1483 = vld [vmem:[%s5 + $0x190] sm:$0xff]
        %v1484 = vld [vmem:[%s5 + $0x198] sm:$0xff]
        %v1485 = vld [vmem:[%s5 + $0x1a0] sm:$0xff]
        %v1486 = vld [vmem:[%s5 + $0x1a8] sm:$0xff]
        %v1487 = vld [vmem:[%s5 + $0x1b0] sm:$0xff]
        %v1488 = vld [vmem:[%s5 + $0x1b8] sm:$0xff]
        %s1489 = scalar_lea.vmem %s6, 8
        %v1490 = vld [vmem:[%s1489] sm:$0x7f]
        %v1492 = vsel %vm1382, %v1490, 0
        %1494 = vmatpush.msra.mxu0 0.0
        %1495 = vmatpush.msra.mxu0 0.0
        %1496 = vmatpush.msra.mxu0 0.0
        %1497 = vmatpush.msra.mxu0 0.0
        %1498 = vmatpush.msra.mxu0 0.0
        %1499 = vmatpush.msra.mxu0 0.0
        %1500 = vmatpush.msra.mxu0 0.0
        %1501 = vmatpush.msra.mxu0 0.0
        %1502 = vmatpush.msra.mxu0 0.0
        %1503 = vmatpush.msra.mxu0 0.0
        %1504 = vmatpush.msra.mxu0 0.0
        %1505 = vmatpush.msra.mxu0 0.0
        %1506 = vmatpush.msra.mxu0 0.0
        %1507 = vmatpush.msra.mxu0 0.0
        %1508 = vmatpush.msra.mxu0 %v1388
        %1509 = vmatpush.msra.mxu0 %v1377
        %1510 = vmatmul.f32.gmra.mxu0 %v1492
        %v1511 = vpop.f32.mrf.mxu0
        %v1512 = vadd.f32 0.0, %v1511
        %1513 = vdwg.mxu0
        %1514 = vmatpush.msra.mxu0 0.0
        %1515 = vmatpush.msra.mxu0 0.0
        %1516 = vmatpush.msra.mxu0 0.0
        %1517 = vmatpush.msra.mxu0 0.0
        %1518 = vmatpush.msra.mxu0 0.0
        %1519 = vmatpush.msra.mxu0 0.0
        %1520 = vmatpush.msra.mxu0 0.0
        %1521 = vmatpush.msra.mxu0 0.0
        %1522 = vmatpush.msra.mxu0 0.0
        %1523 = vmatpush.msra.mxu0 0.0
        %1524 = vmatpush.msra.mxu0 0.0
        %1525 = vmatpush.msra.mxu0 0.0
        %1526 = vmatpush.msra.mxu0 0.0
        %1527 = vmatpush.msra.mxu0 0.0
        %1528 = vmatpush.msra.mxu0 %v1391
        %1529 = vmatpush.msra.mxu0 %v1378
        %1530 = vmatmul.f32.gmra.mxu0 %v1492
        %v1531 = vpop.f32.mrf.mxu0
        %v1532 = vadd.f32 0.0, %v1531
        %1533 = vdwg.mxu0
        %s1534 = scalar_lea.vmem %s5, 448
        %v1535 = vld [vmem:[%s1534] sm:$0xff]
        %v1536 = vld [vmem:[%s1534 + $0x8] sm:$0xff]
        %v1537 = vld [vmem:[%s1534 + $0x10] sm:$0xff]
        %v1538 = vld [vmem:[%s1534 + $0x18] sm:$0xff]
        %v1539 = vld [vmem:[%s1534 + $0x20] sm:$0xff]
        %v1540 = vld [vmem:[%s1534 + $0x28] sm:$0xff]
        %v1541 = vld [vmem:[%s1534 + $0x30] sm:$0xff]
        %v1542 = vld [vmem:[%s1534 + $0x38] sm:$0xff]
        %v1543 = vld [vmem:[%s1534 + $0x40] sm:$0xff]
        %v1544 = vld [vmem:[%s1534 + $0x48] sm:$0xff]
        %v1545 = vld [vmem:[%s1534 + $0x50] sm:$0xff]
        %v1546 = vld [vmem:[%s1534 + $0x58] sm:$0xff]
        %v1547 = vld [vmem:[%s1534 + $0x60] sm:$0xff]
        %v1548 = vld [vmem:[%s1534 + $0x68] sm:$0xff]
        %v1549 = vld [vmem:[%s1534 + $0x70] sm:$0xff]
        %v1550 = vld [vmem:[%s1534 + $0x78] sm:$0xff]
        %v1551 = vld [vmem:[%s1534 + $0x80] sm:$0xff]
        %v1552 = vld [vmem:[%s1534 + $0x88] sm:$0xff]
        %v1553 = vld [vmem:[%s1534 + $0x90] sm:$0xff]
        %v1554 = vld [vmem:[%s1534 + $0x98] sm:$0xff]
        %v1555 = vld [vmem:[%s1534 + $0xa0] sm:$0xff]
        %v1556 = vld [vmem:[%s1534 + $0xa8] sm:$0xff]
        %v1557 = vld [vmem:[%s1534 + $0xb0] sm:$0xff]
        %v1558 = vld [vmem:[%s1534 + $0xb8] sm:$0xff]
        %v1559 = vld [vmem:[%s1534 + $0xc0] sm:$0xff]
        %v1560 = vld [vmem:[%s1534 + $0xc8] sm:$0xff]
        %v1561 = vld [vmem:[%s1534 + $0xd0] sm:$0xff]
        %v1562 = vld [vmem:[%s1534 + $0xd8] sm:$0xff]
        %v1563 = vld [vmem:[%s1534 + $0xe0] sm:$0xff]
        %v1564 = vld [vmem:[%s1534 + $0xe8] sm:$0xff]
        %v1565 = vld [vmem:[%s1534 + $0xf0] sm:$0xff]
        %v1566 = vld [vmem:[%s1534 + $0xf8] sm:$0xff]
        %v1567 = vld [vmem:[%s1534 + $0x100] sm:$0xff]
        %v1568 = vld [vmem:[%s1534 + $0x108] sm:$0xff]
        %v1569 = vld [vmem:[%s1534 + $0x110] sm:$0xff]
        %v1570 = vld [vmem:[%s1534 + $0x118] sm:$0xff]
        %v1571 = vld [vmem:[%s1534 + $0x120] sm:$0xff]
        %v1572 = vld [vmem:[%s1534 + $0x128] sm:$0xff]
        %v1573 = vld [vmem:[%s1534 + $0x130] sm:$0xff]
        %v1574 = vld [vmem:[%s1534 + $0x138] sm:$0xff]
        %v1575 = vld [vmem:[%s1534 + $0x140] sm:$0xff]
        %v1576 = vld [vmem:[%s1534 + $0x148] sm:$0xff]
        %v1577 = vld [vmem:[%s1534 + $0x150] sm:$0xff]
        %v1578 = vld [vmem:[%s1534 + $0x158] sm:$0xff]
        %v1579 = vld [vmem:[%s1534 + $0x160] sm:$0xff]
        %v1580 = vld [vmem:[%s1534 + $0x168] sm:$0xff]
        %v1581 = vld [vmem:[%s1534 + $0x170] sm:$0xff]
        %v1582 = vld [vmem:[%s1534 + $0x178] sm:$0xff]
        %v1583 = vld [vmem:[%s1534 + $0x180] sm:$0xff]
        %v1584 = vld [vmem:[%s1534 + $0x188] sm:$0xff]
        %v1585 = vld [vmem:[%s1534 + $0x190] sm:$0xff]
        %v1586 = vld [vmem:[%s1534 + $0x198] sm:$0xff]
        %v1587 = vld [vmem:[%s1534 + $0x1a0] sm:$0xff]
        %v1588 = vld [vmem:[%s1534 + $0x1a8] sm:$0xff]
        %v1589 = vld [vmem:[%s1534 + $0x1b0] sm:$0xff]
        %v1590 = vld [vmem:[%s1534 + $0x1b8] sm:$0xff]
        %v1592 = vsel %vm966, %v1532, 0
        %1594 = vmatpush.msra.mxu0 %v1565
        %1595 = vmatpush.msra.mxu0 %v1563
        %1596 = vmatpush.msra.mxu0 %v1561
        %1597 = vmatpush.msra.mxu0 %v1559
        %1598 = vmatpush.msra.mxu0 %v1557
        %1599 = vmatpush.msra.mxu0 %v1555
        %1600 = vmatpush.msra.mxu0 %v1553
        %1601 = vmatpush.msra.mxu0 %v1551
        %1602 = vmatpush.msra.mxu0 %v1549
        %1603 = vmatpush.msra.mxu0 %v1547
        %1604 = vmatpush.msra.mxu0 %v1545
        %1605 = vmatpush.msra.mxu0 %v1543
        %1606 = vmatpush.msra.mxu0 %v1541
        %1607 = vmatpush.msra.mxu0 %v1539
        %1608 = vmatpush.msra.mxu0 %v1537
        %1609 = vmatpush.msra.mxu0 %v1535
        %1610 = vmatmul.f32.gmra.mxu0 %v1512
        %v1611 = vpop.f32.mrf.mxu0
        %v1612 = vadd.f32 0.0, %v1611
        %1613 = vdwg.mxu0
        %1614 = vmatpush.msra.mxu0 0.0
        %1615 = vmatpush.msra.mxu0 0.0
        %1616 = vmatpush.msra.mxu0 0.0
        %1617 = vmatpush.msra.mxu0 0.0
        %1618 = vmatpush.msra.mxu0 %v1589
        %1619 = vmatpush.msra.mxu0 %v1587
        %1620 = vmatpush.msra.mxu0 %v1585
        %1621 = vmatpush.msra.mxu0 %v1583
        %1622 = vmatpush.msra.mxu0 %v1581
        %1623 = vmatpush.msra.mxu0 %v1579
        %1624 = vmatpush.msra.mxu0 %v1577
        %1625 = vmatpush.msra.mxu0 %v1575
        %1626 = vmatpush.msra.mxu0 %v1573
        %1627 = vmatpush.msra.mxu0 %v1571
        %1628 = vmatpush.msra.mxu0 %v1569
        %1629 = vmatpush.msra.mxu0 %v1567
        %1630 = vmatmul.f32.gmra.mxu0 %v1592
        %v1631 = vpop.f32.mrf.mxu0
        %v1632 = vadd.f32 %v1612, %v1631
        %1633 = vdwg.mxu0
        %1634 = vmatpush.msra.mxu0 %v1566
        %1635 = vmatpush.msra.mxu0 %v1564
        %1636 = vmatpush.msra.mxu0 %v1562
        %1637 = vmatpush.msra.mxu0 %v1560
        %1638 = vmatpush.msra.mxu0 %v1558
        %1639 = vmatpush.msra.mxu0 %v1556
        %1640 = vmatpush.msra.mxu0 %v1554
        %1641 = vmatpush.msra.mxu0 %v1552
        %1642 = vmatpush.msra.mxu0 %v1550
        %1643 = vmatpush.msra.mxu0 %v1548
        %1644 = vmatpush.msra.mxu0 %v1546
        %1645 = vmatpush.msra.mxu0 %v1544
        %1646 = vmatpush.msra.mxu0 %v1542
        %1647 = vmatpush.msra.mxu0 %v1540
        %1648 = vmatpush.msra.mxu0 %v1538
        %1649 = vmatpush.msra.mxu0 %v1536
        %1650 = vmatmul.f32.gmra.mxu0 %v1512
        %v1651 = vpop.f32.mrf.mxu0
        %v1652 = vadd.f32 0.0, %v1651
        %1653 = vdwg.mxu0
        %1654 = vmatpush.msra.mxu0 0.0
        %1655 = vmatpush.msra.mxu0 0.0
        %1656 = vmatpush.msra.mxu0 0.0
        %1657 = vmatpush.msra.mxu0 0.0
        %1658 = vmatpush.msra.mxu0 %v1590
        %1659 = vmatpush.msra.mxu0 %v1588
        %1660 = vmatpush.msra.mxu0 %v1586
        %1661 = vmatpush.msra.mxu0 %v1584
        %1662 = vmatpush.msra.mxu0 %v1582
        %1663 = vmatpush.msra.mxu0 %v1580
        %1664 = vmatpush.msra.mxu0 %v1578
        %1665 = vmatpush.msra.mxu0 %v1576
        %1666 = vmatpush.msra.mxu0 %v1574
        %1667 = vmatpush.msra.mxu0 %v1572
        %1668 = vmatpush.msra.mxu0 %v1570
        %1669 = vmatpush.msra.mxu0 %v1568
        %1670 = vmatmul.f32.gmra.mxu0 %v1592
        %v1671 = vpop.f32.mrf.mxu0
        %v1672 = vadd.f32 %v1652, %v1671
        %1673 = vdwg.mxu0
        %v1675 = vsel %vm966, %v1431, 0
        %1677 = vmatpush.msra.mxu0 %v1463
        %1678 = vmatpush.msra.mxu0 %v1461
        %1679 = vmatpush.msra.mxu0 %v1459
        %1680 = vmatpush.msra.mxu0 %v1457
        %1681 = vmatpush.msra.mxu0 %v1455
        %1682 = vmatpush.msra.mxu0 %v1453
        %1683 = vmatpush.msra.mxu0 %v1451
        %1684 = vmatpush.msra.mxu0 %v1449
        %1685 = vmatpush.msra.mxu0 %v1447
        %1686 = vmatpush.msra.mxu0 %v1445
        %1687 = vmatpush.msra.mxu0 %v1443
        %1688 = vmatpush.msra.mxu0 %v1441
        %1689 = vmatpush.msra.mxu0 %v1439
        %1690 = vmatpush.msra.mxu0 %v1437
        %1691 = vmatpush.msra.mxu0 %v1435
        %1692 = vmatpush.msra.mxu0 %v1433
        %1693 = vmatmul.f32.gmra.mxu0 %v1411
        %v1694 = vpop.f32.mrf.mxu0
        %v1695 = vadd.f32 %v1632, %v1694
        %1696 = vdwg.mxu0
        %1697 = vmatpush.msra.mxu0 0.0
        %1698 = vmatpush.msra.mxu0 0.0
        %1699 = vmatpush.msra.mxu0 0.0
        %1700 = vmatpush.msra.mxu0 0.0
        %1701 = vmatpush.msra.mxu0 %v1487
        %1702 = vmatpush.msra.mxu0 %v1485
        %1703 = vmatpush.msra.mxu0 %v1483
        %1704 = vmatpush.msra.mxu0 %v1481
        %1705 = vmatpush.msra.mxu0 %v1479
        %1706 = vmatpush.msra.mxu0 %v1477
        %1707 = vmatpush.msra.mxu0 %v1475
        %1708 = vmatpush.msra.mxu0 %v1473
        %1709 = vmatpush.msra.mxu0 %v1471
        %1710 = vmatpush.msra.mxu0 %v1469
        %1711 = vmatpush.msra.mxu0 %v1467
        %1712 = vmatpush.msra.mxu0 %v1465
        %1713 = vmatmul.f32.gmra.mxu0 %v1675
        %v1714 = vpop.f32.mrf.mxu0
        %v1715 = vadd.f32 %v1695, %v1714
        %1716 = vdwg.mxu0
        %1717 = vmatpush.msra.mxu0 %v1464
        %1718 = vmatpush.msra.mxu0 %v1462
        %1719 = vmatpush.msra.mxu0 %v1460
        %1720 = vmatpush.msra.mxu0 %v1458
        %1721 = vmatpush.msra.mxu0 %v1456
        %1722 = vmatpush.msra.mxu0 %v1454
        %1723 = vmatpush.msra.mxu0 %v1452
        %1724 = vmatpush.msra.mxu0 %v1450
        %1725 = vmatpush.msra.mxu0 %v1448
        %1726 = vmatpush.msra.mxu0 %v1446
        %1727 = vmatpush.msra.mxu0 %v1444
        %1728 = vmatpush.msra.mxu0 %v1442
        %1729 = vmatpush.msra.mxu0 %v1440
        %1730 = vmatpush.msra.mxu0 %v1438
        %1731 = vmatpush.msra.mxu0 %v1436
        %1732 = vmatpush.msra.mxu0 %v1434
        %1733 = vmatmul.f32.gmra.mxu0 %v1411
        %v1734 = vpop.f32.mrf.mxu0
        %v1735 = vadd.f32 %v1672, %v1734
        %1736 = vdwg.mxu0
        %1737 = vmatpush.msra.mxu0 0.0
        %1738 = vmatpush.msra.mxu0 0.0
        %1739 = vmatpush.msra.mxu0 0.0
        %1740 = vmatpush.msra.mxu0 0.0
        %1741 = vmatpush.msra.mxu0 %v1488
        %1742 = vmatpush.msra.mxu0 %v1486
        %1743 = vmatpush.msra.mxu0 %v1484
        %1744 = vmatpush.msra.mxu0 %v1482
        %1745 = vmatpush.msra.mxu0 %v1480
        %1746 = vmatpush.msra.mxu0 %v1478
        %1747 = vmatpush.msra.mxu0 %v1476
        %1748 = vmatpush.msra.mxu0 %v1474
        %1749 = vmatpush.msra.mxu0 %v1472
        %1750 = vmatpush.msra.mxu0 %v1470
        %1751 = vmatpush.msra.mxu0 %v1468
        %1752 = vmatpush.msra.mxu0 %v1466
        %1753 = vmatmul.f32.gmra.mxu0 %v1675
        %v1754 = vpop.f32.mrf.mxu0
        %v1755 = vadd.f32 %v1735, %v1754
        %1756 = vdwg.mxu0
        %s1757 = scalar_lea.vmem %s6, 16
        %v1758 = vld [vmem:[%s1757] sm:$0x7f]
        %v1760 = vsel %vm1382, %v1758, 0
        %1762 = vmatpush.msra.mxu0 0.0
        %1763 = vmatpush.msra.mxu0 0.0
        %1764 = vmatpush.msra.mxu0 0.0
        %1765 = vmatpush.msra.mxu0 0.0
        %1766 = vmatpush.msra.mxu0 0.0
        %1767 = vmatpush.msra.mxu0 0.0
        %1768 = vmatpush.msra.mxu0 0.0
        %1769 = vmatpush.msra.mxu0 0.0
        %1770 = vmatpush.msra.mxu0 0.0
        %1771 = vmatpush.msra.mxu0 0.0
        %1772 = vmatpush.msra.mxu0 0.0
        %1773 = vmatpush.msra.mxu0 0.0
        %1774 = vmatpush.msra.mxu0 0.0
        %1775 = vmatpush.msra.mxu0 0.0
        %1776 = vmatpush.msra.mxu0 %v1388
        %1777 = vmatpush.msra.mxu0 %v1377
        %1778 = vmatmul.f32.gmra.mxu0 %v1760
        %v1779 = vpop.f32.mrf.mxu0
        %v1780 = vadd.f32 0.0, %v1779
        %1781 = vdwg.mxu0
        %1782 = vmatpush.msra.mxu0 0.0
        %1783 = vmatpush.msra.mxu0 0.0
        %1784 = vmatpush.msra.mxu0 0.0
        %1785 = vmatpush.msra.mxu0 0.0
        %1786 = vmatpush.msra.mxu0 0.0
        %1787 = vmatpush.msra.mxu0 0.0
        %1788 = vmatpush.msra.mxu0 0.0
        %1789 = vmatpush.msra.mxu0 0.0
        %1790 = vmatpush.msra.mxu0 0.0
        %1791 = vmatpush.msra.mxu0 0.0
        %1792 = vmatpush.msra.mxu0 0.0
        %1793 = vmatpush.msra.mxu0 0.0
        %1794 = vmatpush.msra.mxu0 0.0
        %1795 = vmatpush.msra.mxu0 0.0
        %1796 = vmatpush.msra.mxu0 %v1391
        %1797 = vmatpush.msra.mxu0 %v1378
        %1798 = vmatmul.f32.gmra.mxu0 %v1760
        %v1799 = vpop.f32.mrf.mxu0
        %v1800 = vadd.f32 0.0, %v1799
        %1801 = vdwg.mxu0
        %s1802 = scalar_lea.vmem %s5, 896
        %v1803 = vld [vmem:[%s1802] sm:$0xff]
        %v1804 = vld [vmem:[%s1802 + $0x8] sm:$0xff]
        %v1805 = vld [vmem:[%s1802 + $0x10] sm:$0xff]
        %v1806 = vld [vmem:[%s1802 + $0x18] sm:$0xff]
        %v1807 = vld [vmem:[%s1802 + $0x20] sm:$0xff]
        %v1808 = vld [vmem:[%s1802 + $0x28] sm:$0xff]
        %v1809 = vld [vmem:[%s1802 + $0x30] sm:$0xff]
        %v1810 = vld [vmem:[%s1802 + $0x38] sm:$0xff]
        %v1811 = vld [vmem:[%s1802 + $0x40] sm:$0xff]
        %v1812 = vld [vmem:[%s1802 + $0x48] sm:$0xff]
        %v1813 = vld [vmem:[%s1802 + $0x50] sm:$0xff]
        %v1814 = vld [vmem:[%s1802 + $0x58] sm:$0xff]
        %v1815 = vld [vmem:[%s1802 + $0x60] sm:$0xff]
        %v1816 = vld [vmem:[%s1802 + $0x68] sm:$0xff]
        %v1817 = vld [vmem:[%s1802 + $0x70] sm:$0xff]
        %v1818 = vld [vmem:[%s1802 + $0x78] sm:$0xff]
        %v1819 = vld [vmem:[%s1802 + $0x80] sm:$0xff]
        %v1820 = vld [vmem:[%s1802 + $0x88] sm:$0xff]
        %v1821 = vld [vmem:[%s1802 + $0x90] sm:$0xff]
        %v1822 = vld [vmem:[%s1802 + $0x98] sm:$0xff]
        %v1823 = vld [vmem:[%s1802 + $0xa0] sm:$0xff]
        %v1824 = vld [vmem:[%s1802 + $0xa8] sm:$0xff]
        %v1825 = vld [vmem:[%s1802 + $0xb0] sm:$0xff]
        %v1826 = vld [vmem:[%s1802 + $0xb8] sm:$0xff]
        %v1827 = vld [vmem:[%s1802 + $0xc0] sm:$0xff]
        %v1828 = vld [vmem:[%s1802 + $0xc8] sm:$0xff]
        %v1829 = vld [vmem:[%s1802 + $0xd0] sm:$0xff]
        %v1830 = vld [vmem:[%s1802 + $0xd8] sm:$0xff]
        %v1831 = vld [vmem:[%s1802 + $0xe0] sm:$0xff]
        %v1832 = vld [vmem:[%s1802 + $0xe8] sm:$0xff]
        %v1833 = vld [vmem:[%s1802 + $0xf0] sm:$0xff]
        %v1834 = vld [vmem:[%s1802 + $0xf8] sm:$0xff]
        %v1835 = vld [vmem:[%s1802 + $0x100] sm:$0xff]
        %v1836 = vld [vmem:[%s1802 + $0x108] sm:$0xff]
        %v1837 = vld [vmem:[%s1802 + $0x110] sm:$0xff]
        %v1838 = vld [vmem:[%s1802 + $0x118] sm:$0xff]
        %v1839 = vld [vmem:[%s1802 + $0x120] sm:$0xff]
        %v1840 = vld [vmem:[%s1802 + $0x128] sm:$0xff]
        %v1841 = vld [vmem:[%s1802 + $0x130] sm:$0xff]
        %v1842 = vld [vmem:[%s1802 + $0x138] sm:$0xff]
        %v1843 = vld [vmem:[%s1802 + $0x140] sm:$0xff]
        %v1844 = vld [vmem:[%s1802 + $0x148] sm:$0xff]
        %v1845 = vld [vmem:[%s1802 + $0x150] sm:$0xff]
        %v1846 = vld [vmem:[%s1802 + $0x158] sm:$0xff]
        %v1847 = vld [vmem:[%s1802 + $0x160] sm:$0xff]
        %v1848 = vld [vmem:[%s1802 + $0x168] sm:$0xff]
        %v1849 = vld [vmem:[%s1802 + $0x170] sm:$0xff]
        %v1850 = vld [vmem:[%s1802 + $0x178] sm:$0xff]
        %v1851 = vld [vmem:[%s1802 + $0x180] sm:$0xff]
        %v1852 = vld [vmem:[%s1802 + $0x188] sm:$0xff]
        %v1853 = vld [vmem:[%s1802 + $0x190] sm:$0xff]
        %v1854 = vld [vmem:[%s1802 + $0x198] sm:$0xff]
        %v1855 = vld [vmem:[%s1802 + $0x1a0] sm:$0xff]
        %v1856 = vld [vmem:[%s1802 + $0x1a8] sm:$0xff]
        %v1857 = vld [vmem:[%s1802 + $0x1b0] sm:$0xff]
        %v1858 = vld [vmem:[%s1802 + $0x1b8] sm:$0xff]
        %v1860 = vsel %vm966, %v1800, 0
        %1862 = vmatpush.msra.mxu0 %v1833
        %1863 = vmatpush.msra.mxu0 %v1831
        %1864 = vmatpush.msra.mxu0 %v1829
        %1865 = vmatpush.msra.mxu0 %v1827
        %1866 = vmatpush.msra.mxu0 %v1825
        %1867 = vmatpush.msra.mxu0 %v1823
        %1868 = vmatpush.msra.mxu0 %v1821
        %1869 = vmatpush.msra.mxu0 %v1819
        %1870 = vmatpush.msra.mxu0 %v1817
        %1871 = vmatpush.msra.mxu0 %v1815
        %1872 = vmatpush.msra.mxu0 %v1813
        %1873 = vmatpush.msra.mxu0 %v1811
        %1874 = vmatpush.msra.mxu0 %v1809
        %1875 = vmatpush.msra.mxu0 %v1807
        %1876 = vmatpush.msra.mxu0 %v1805
        %1877 = vmatpush.msra.mxu0 %v1803
        %1878 = vmatmul.f32.gmra.mxu0 %v1780
        %v1879 = vpop.f32.mrf.mxu0
        %v1880 = vadd.f32 0.0, %v1879
        %1881 = vdwg.mxu0
        %1882 = vmatpush.msra.mxu0 0.0
        %1883 = vmatpush.msra.mxu0 0.0
        %1884 = vmatpush.msra.mxu0 0.0
        %1885 = vmatpush.msra.mxu0 0.0
        %1886 = vmatpush.msra.mxu0 %v1857
        %1887 = vmatpush.msra.mxu0 %v1855
        %1888 = vmatpush.msra.mxu0 %v1853
        %1889 = vmatpush.msra.mxu0 %v1851
        %1890 = vmatpush.msra.mxu0 %v1849
        %1891 = vmatpush.msra.mxu0 %v1847
        %1892 = vmatpush.msra.mxu0 %v1845
        %1893 = vmatpush.msra.mxu0 %v1843
        %1894 = vmatpush.msra.mxu0 %v1841
        %1895 = vmatpush.msra.mxu0 %v1839
        %1896 = vmatpush.msra.mxu0 %v1837
        %1897 = vmatpush.msra.mxu0 %v1835
        %1898 = vmatmul.f32.gmra.mxu0 %v1860
        %v1899 = vpop.f32.mrf.mxu0
        %v1900 = vadd.f32 %v1880, %v1899
        %1901 = vdwg.mxu0
        %1902 = vmatpush.msra.mxu0 %v1834
        %1903 = vmatpush.msra.mxu0 %v1832
        %1904 = vmatpush.msra.mxu0 %v1830
        %1905 = vmatpush.msra.mxu0 %v1828
        %1906 = vmatpush.msra.mxu0 %v1826
        %1907 = vmatpush.msra.mxu0 %v1824
        %1908 = vmatpush.msra.mxu0 %v1822
        %1909 = vmatpush.msra.mxu0 %v1820
        %1910 = vmatpush.msra.mxu0 %v1818
        %1911 = vmatpush.msra.mxu0 %v1816
        %1912 = vmatpush.msra.mxu0 %v1814
        %1913 = vmatpush.msra.mxu0 %v1812
        %1914 = vmatpush.msra.mxu0 %v1810
        %1915 = vmatpush.msra.mxu0 %v1808
        %1916 = vmatpush.msra.mxu0 %v1806
        %1917 = vmatpush.msra.mxu0 %v1804
        %1918 = vmatmul.f32.gmra.mxu0 %v1780
        %v1919 = vpop.f32.mrf.mxu0
        %v1920 = vadd.f32 0.0, %v1919
        %1921 = vdwg.mxu0
        %1922 = vmatpush.msra.mxu0 0.0
        %1923 = vmatpush.msra.mxu0 0.0
        %1924 = vmatpush.msra.mxu0 0.0
        %1925 = vmatpush.msra.mxu0 0.0
        %1926 = vmatpush.msra.mxu0 %v1858
        %1927 = vmatpush.msra.mxu0 %v1856
        %1928 = vmatpush.msra.mxu0 %v1854
        %1929 = vmatpush.msra.mxu0 %v1852
        %1930 = vmatpush.msra.mxu0 %v1850
        %1931 = vmatpush.msra.mxu0 %v1848
        %1932 = vmatpush.msra.mxu0 %v1846
        %1933 = vmatpush.msra.mxu0 %v1844
        %1934 = vmatpush.msra.mxu0 %v1842
        %1935 = vmatpush.msra.mxu0 %v1840
        %1936 = vmatpush.msra.mxu0 %v1838
        %1937 = vmatpush.msra.mxu0 %v1836
        %1938 = vmatmul.f32.gmra.mxu0 %v1860
        %v1939 = vpop.f32.mrf.mxu0
        %v1940 = vadd.f32 %v1920, %v1939
        %1941 = vdwg.mxu0
        %v1942 = vadd.f32 %v1715, %v1900
        %v1943 = vadd.f32 %v1755, %v1940
        %v1944 = vmax.f32 %v1942, 0.0
        %v1945 = vmax.f32 %v1943, 0.0
        %v1946 = vld [vmem:[%s8] sm:$0x1]
        %v1947 = vld [vmem:[%s7] sm:$0xff]
        %v1948 = vld [vmem:[%s7 + $0x8] sm:$0xff]
        %v1949 = vld [vmem:[%s7 + $0x10] sm:$0xff]
        %v1950 = vld [vmem:[%s7 + $0x18] sm:$0xff]
        %v1951 = vld [vmem:[%s7 + $0x20] sm:$0xff]
        %v1952 = vld [vmem:[%s7 + $0x28] sm:$0xff]
        %v1953 = vld [vmem:[%s7 + $0x30] sm:$0xff]
        %v1954 = vld [vmem:[%s7 + $0x38] sm:$0xff]
        %v1955 = vld [vmem:[%s7 + $0x40] sm:$0xff]
        %v1956 = vld [vmem:[%s7 + $0x48] sm:$0xff]
        %v1957 = vld [vmem:[%s7 + $0x50] sm:$0xff]
        %v1958 = vld [vmem:[%s7 + $0x58] sm:$0xff]
        %v1959 = vld [vmem:[%s7 + $0x60] sm:$0xff]
        %v1960 = vld [vmem:[%s7 + $0x68] sm:$0xff]
        %v1961 = vld [vmem:[%s7 + $0x70] sm:$0xff]
        %v1962 = vld [vmem:[%s7 + $0x78] sm:$0xff]
        %v1963 = vld [vmem:[%s7 + $0x80] sm:$0xff]
        %v1964 = vld [vmem:[%s7 + $0x88] sm:$0xff]
        %v1965 = vld [vmem:[%s7 + $0x90] sm:$0xff]
        %v1966 = vld [vmem:[%s7 + $0x98] sm:$0xff]
        %v1967 = vld [vmem:[%s7 + $0xa0] sm:$0xff]
        %v1968 = vld [vmem:[%s7 + $0xa8] sm:$0xff]
        %v1969 = vld [vmem:[%s7 + $0xb0] sm:$0xff]
        %v1970 = vld [vmem:[%s7 + $0xb8] sm:$0xff]
        %v1971 = vld [vmem:[%s7 + $0xc0] sm:$0xff]
        %v1972 = vld [vmem:[%s7 + $0xc8] sm:$0xff]
        %v1973 = vld [vmem:[%s7 + $0xd0] sm:$0xff]
        %v1974 = vld [vmem:[%s7 + $0xd8] sm:$0xff]
        %v1976 = vsel %vm966, %v1945, 0
        %1978 = vmatpush.msra.mxu0 %v1962
        %1979 = vmatpush.msra.mxu0 %v1961
        %1980 = vmatpush.msra.mxu0 %v1960
        %1981 = vmatpush.msra.mxu0 %v1959
        %1982 = vmatpush.msra.mxu0 %v1958
        %1983 = vmatpush.msra.mxu0 %v1957
        %1984 = vmatpush.msra.mxu0 %v1956
        %1985 = vmatpush.msra.mxu0 %v1955
        %1986 = vmatpush.msra.mxu0 %v1954
        %1987 = vmatpush.msra.mxu0 %v1953
        %1988 = vmatpush.msra.mxu0 %v1952
        %1989 = vmatpush.msra.mxu0 %v1951
        %1990 = vmatpush.msra.mxu0 %v1950
        %1991 = vmatpush.msra.mxu0 %v1949
        %1992 = vmatpush.msra.mxu0 %v1948
        %1993 = vmatpush.msra.mxu0 %v1947
        %1994 = vmatmul.f32.gmra.mxu0 %v1944
        %v1995 = vpop.f32.mrf.mxu0
        %v1996 = vadd.f32 0.0, %v1995
        %1997 = vdwg.mxu0
        %1998 = vmatpush.msra.mxu0 0.0
        %1999 = vmatpush.msra.mxu0 0.0
        %2000 = vmatpush.msra.mxu0 0.0
        %2001 = vmatpush.msra.mxu0 0.0
        %2002 = vmatpush.msra.mxu0 %v1974
        %2003 = vmatpush.msra.mxu0 %v1973
        %2004 = vmatpush.msra.mxu0 %v1972
        %2005 = vmatpush.msra.mxu0 %v1971
        %2006 = vmatpush.msra.mxu0 %v1970
        %2007 = vmatpush.msra.mxu0 %v1969
        %2008 = vmatpush.msra.mxu0 %v1968
        %2009 = vmatpush.msra.mxu0 %v1967
        %2010 = vmatpush.msra.mxu0 %v1966
        %2011 = vmatpush.msra.mxu0 %v1965
        %2012 = vmatpush.msra.mxu0 %v1964
        %2013 = vmatpush.msra.mxu0 %v1963
        %2014 = vmatmul.f32.gmra.mxu0 %v1976
        %v2015 = vpop.f32.mrf.mxu0
        %v2016 = vadd.f32 %v1996, %v2015
        %2017 = vdwg.mxu0
        %v2018 = vadd.f32 %v1946, %v2016
        %s2019 = scalar_lea.vmem %s7, 224
        %v2020 = vld [vmem:[%s2019] sm:$0xff]
        %v2021 = vld [vmem:[%s2019 + $0x8] sm:$0xff]
        %v2022 = vld [vmem:[%s2019 + $0x10] sm:$0xff]
        %v2023 = vld [vmem:[%s2019 + $0x18] sm:$0xff]
        %v2024 = vld [vmem:[%s2019 + $0x20] sm:$0xff]
        %v2025 = vld [vmem:[%s2019 + $0x28] sm:$0xff]
        %v2026 = vld [vmem:[%s2019 + $0x30] sm:$0xff]
        %v2027 = vld [vmem:[%s2019 + $0x38] sm:$0xff]
        %v2028 = vld [vmem:[%s2019 + $0x40] sm:$0xff]
        %v2029 = vld [vmem:[%s2019 + $0x48] sm:$0xff]
        %v2030 = vld [vmem:[%s2019 + $0x50] sm:$0xff]
        %v2031 = vld [vmem:[%s2019 + $0x58] sm:$0xff]
        %v2032 = vld [vmem:[%s2019 + $0x60] sm:$0xff]
        %v2033 = vld [vmem:[%s2019 + $0x68] sm:$0xff]
        %v2034 = vld [vmem:[%s2019 + $0x70] sm:$0xff]
        %v2035 = vld [vmem:[%s2019 + $0x78] sm:$0xff]
        %v2036 = vld [vmem:[%s2019 + $0x80] sm:$0xff]
        %v2037 = vld [vmem:[%s2019 + $0x88] sm:$0xff]
        %v2038 = vld [vmem:[%s2019 + $0x90] sm:$0xff]
        %v2039 = vld [vmem:[%s2019 + $0x98] sm:$0xff]
        %v2040 = vld [vmem:[%s2019 + $0xa0] sm:$0xff]
        %v2041 = vld [vmem:[%s2019 + $0xa8] sm:$0xff]
        %v2042 = vld [vmem:[%s2019 + $0xb0] sm:$0xff]
        %v2043 = vld [vmem:[%s2019 + $0xb8] sm:$0xff]
        %v2044 = vld [vmem:[%s2019 + $0xc0] sm:$0xff]
        %v2045 = vld [vmem:[%s2019 + $0xc8] sm:$0xff]
        %v2046 = vld [vmem:[%s2019 + $0xd0] sm:$0xff]
        %v2047 = vld [vmem:[%s2019 + $0xd8] sm:$0xff]
        %v2049 = vrot.slane %v1944, 1
        %v2050 = vrot.slane %v1945, 1
        %v2052 = vsel %vm966, %v2050, 0
        %2054 = vmatpush.msra.mxu0 %v2035
        %2055 = vmatpush.msra.mxu0 %v2034
        %2056 = vmatpush.msra.mxu0 %v2033
        %2057 = vmatpush.msra.mxu0 %v2032
        %2058 = vmatpush.msra.mxu0 %v2031
        %2059 = vmatpush.msra.mxu0 %v2030
        %2060 = vmatpush.msra.mxu0 %v2029
        %2061 = vmatpush.msra.mxu0 %v2028
        %2062 = vmatpush.msra.mxu0 %v2027
        %2063 = vmatpush.msra.mxu0 %v2026
        %2064 = vmatpush.msra.mxu0 %v2025
        %2065 = vmatpush.msra.mxu0 %v2024
        %2066 = vmatpush.msra.mxu0 %v2023
        %2067 = vmatpush.msra.mxu0 %v2022
        %2068 = vmatpush.msra.mxu0 %v2021
        %2069 = vmatpush.msra.mxu0 %v2020
        %2070 = vmatmul.f32.gmra.mxu0 %v2049
        %v2071 = vpop.f32.mrf.mxu0
        %v2072 = vadd.f32 0.0, %v2071
        %2073 = vdwg.mxu0
        %2074 = vmatpush.msra.mxu0 0.0
        %2075 = vmatpush.msra.mxu0 0.0
        %2076 = vmatpush.msra.mxu0 0.0
        %2077 = vmatpush.msra.mxu0 0.0
        %2078 = vmatpush.msra.mxu0 %v2047
        %2079 = vmatpush.msra.mxu0 %v2046
        %2080 = vmatpush.msra.mxu0 %v2045
        %2081 = vmatpush.msra.mxu0 %v2044
        %2082 = vmatpush.msra.mxu0 %v2043
        %2083 = vmatpush.msra.mxu0 %v2042
        %2084 = vmatpush.msra.mxu0 %v2041
        %2085 = vmatpush.msra.mxu0 %v2040
        %2086 = vmatpush.msra.mxu0 %v2039
        %2087 = vmatpush.msra.mxu0 %v2038
        %2088 = vmatpush.msra.mxu0 %v2037
        %2089 = vmatpush.msra.mxu0 %v2036
        %2090 = vmatmul.f32.gmra.mxu0 %v2052
        %v2091 = vpop.f32.mrf.mxu0
        %v2092 = vadd.f32 %v2072, %v2091
        %2093 = vdwg.mxu0
        %v2094 = vadd.f32 %v2018, %v2092
        %s2095 = scalar_lea.vmem %s7, 448
        %v2096 = vld [vmem:[%s2095] sm:$0xff]
        %v2097 = vld [vmem:[%s2095 + $0x8] sm:$0xff]
        %v2098 = vld [vmem:[%s2095 + $0x10] sm:$0xff]
        %v2099 = vld [vmem:[%s2095 + $0x18] sm:$0xff]
        %v2100 = vld [vmem:[%s2095 + $0x20] sm:$0xff]
        %v2101 = vld [vmem:[%s2095 + $0x28] sm:$0xff]
        %v2102 = vld [vmem:[%s2095 + $0x30] sm:$0xff]
        %v2103 = vld [vmem:[%s2095 + $0x38] sm:$0xff]
        %v2104 = vld [vmem:[%s2095 + $0x40] sm:$0xff]
        %v2105 = vld [vmem:[%s2095 + $0x48] sm:$0xff]
        %v2106 = vld [vmem:[%s2095 + $0x50] sm:$0xff]
        %v2107 = vld [vmem:[%s2095 + $0x58] sm:$0xff]
        %v2108 = vld [vmem:[%s2095 + $0x60] sm:$0xff]
        %v2109 = vld [vmem:[%s2095 + $0x68] sm:$0xff]
        %v2110 = vld [vmem:[%s2095 + $0x70] sm:$0xff]
        %v2111 = vld [vmem:[%s2095 + $0x78] sm:$0xff]
        %v2112 = vld [vmem:[%s2095 + $0x80] sm:$0xff]
        %v2113 = vld [vmem:[%s2095 + $0x88] sm:$0xff]
        %v2114 = vld [vmem:[%s2095 + $0x90] sm:$0xff]
        %v2115 = vld [vmem:[%s2095 + $0x98] sm:$0xff]
        %v2116 = vld [vmem:[%s2095 + $0xa0] sm:$0xff]
        %v2117 = vld [vmem:[%s2095 + $0xa8] sm:$0xff]
        %v2118 = vld [vmem:[%s2095 + $0xb0] sm:$0xff]
        %v2119 = vld [vmem:[%s2095 + $0xb8] sm:$0xff]
        %v2120 = vld [vmem:[%s2095 + $0xc0] sm:$0xff]
        %v2121 = vld [vmem:[%s2095 + $0xc8] sm:$0xff]
        %v2122 = vld [vmem:[%s2095 + $0xd0] sm:$0xff]
        %v2123 = vld [vmem:[%s2095 + $0xd8] sm:$0xff]
        %v2124 = vrot.slane %v1944, 2
        %v2125 = vrot.slane %v1945, 2
        %v2127 = vsel %vm966, %v2125, 0
        %2129 = vmatpush.msra.mxu0 %v2111
        %2130 = vmatpush.msra.mxu0 %v2110
        %2131 = vmatpush.msra.mxu0 %v2109
        %2132 = vmatpush.msra.mxu0 %v2108
        %2133 = vmatpush.msra.mxu0 %v2107
        %2134 = vmatpush.msra.mxu0 %v2106
        %2135 = vmatpush.msra.mxu0 %v2105
        %2136 = vmatpush.msra.mxu0 %v2104
        %2137 = vmatpush.msra.mxu0 %v2103
        %2138 = vmatpush.msra.mxu0 %v2102
        %2139 = vmatpush.msra.mxu0 %v2101
        %2140 = vmatpush.msra.mxu0 %v2100
        %2141 = vmatpush.msra.mxu0 %v2099
        %2142 = vmatpush.msra.mxu0 %v2098
        %2143 = vmatpush.msra.mxu0 %v2097
        %2144 = vmatpush.msra.mxu0 %v2096
        %2145 = vmatmul.f32.gmra.mxu0 %v2124
        %v2146 = vpop.f32.mrf.mxu0
        %v2147 = vadd.f32 0.0, %v2146
        %2148 = vdwg.mxu0
        %2149 = vmatpush.msra.mxu0 0.0
        %2150 = vmatpush.msra.mxu0 0.0
        %2151 = vmatpush.msra.mxu0 0.0
        %2152 = vmatpush.msra.mxu0 0.0
        %2153 = vmatpush.msra.mxu0 %v2123
        %2154 = vmatpush.msra.mxu0 %v2122
        %2155 = vmatpush.msra.mxu0 %v2121
        %2156 = vmatpush.msra.mxu0 %v2120
        %2157 = vmatpush.msra.mxu0 %v2119
        %2158 = vmatpush.msra.mxu0 %v2118
        %2159 = vmatpush.msra.mxu0 %v2117
        %2160 = vmatpush.msra.mxu0 %v2116
        %2161 = vmatpush.msra.mxu0 %v2115
        %2162 = vmatpush.msra.mxu0 %v2114
        %2163 = vmatpush.msra.mxu0 %v2113
        %2164 = vmatpush.msra.mxu0 %v2112
        %2165 = vmatmul.f32.gmra.mxu0 %v2127
        %v2166 = vpop.f32.mrf.mxu0
        %v2167 = vadd.f32 %v2147, %v2166
        %2168 = vdwg.mxu0
        %v2169 = vadd.f32 %v2094, %v2167
        %s2170 = scalar_lea.vmem %s7, 672
        %v2171 = vld [vmem:[%s2170] sm:$0xff]
        %v2172 = vld [vmem:[%s2170 + $0x8] sm:$0xff]
        %v2173 = vld [vmem:[%s2170 + $0x10] sm:$0xff]
        %v2174 = vld [vmem:[%s2170 + $0x18] sm:$0xff]
        %v2175 = vld [vmem:[%s2170 + $0x20] sm:$0xff]
        %v2176 = vld [vmem:[%s2170 + $0x28] sm:$0xff]
        %v2177 = vld [vmem:[%s2170 + $0x30] sm:$0xff]
        %v2178 = vld [vmem:[%s2170 + $0x38] sm:$0xff]
        %v2179 = vld [vmem:[%s2170 + $0x40] sm:$0xff]
        %v2180 = vld [vmem:[%s2170 + $0x48] sm:$0xff]
        %v2181 = vld [vmem:[%s2170 + $0x50] sm:$0xff]
        %v2182 = vld [vmem:[%s2170 + $0x58] sm:$0xff]
        %v2183 = vld [vmem:[%s2170 + $0x60] sm:$0xff]
        %v2184 = vld [vmem:[%s2170 + $0x68] sm:$0xff]
        %v2185 = vld [vmem:[%s2170 + $0x70] sm:$0xff]
        %v2186 = vld [vmem:[%s2170 + $0x78] sm:$0xff]
        %v2187 = vld [vmem:[%s2170 + $0x80] sm:$0xff]
        %v2188 = vld [vmem:[%s2170 + $0x88] sm:$0xff]
        %v2189 = vld [vmem:[%s2170 + $0x90] sm:$0xff]
        %v2190 = vld [vmem:[%s2170 + $0x98] sm:$0xff]
        %v2191 = vld [vmem:[%s2170 + $0xa0] sm:$0xff]
        %v2192 = vld [vmem:[%s2170 + $0xa8] sm:$0xff]
        %v2193 = vld [vmem:[%s2170 + $0xb0] sm:$0xff]
        %v2194 = vld [vmem:[%s2170 + $0xb8] sm:$0xff]
        %v2195 = vld [vmem:[%s2170 + $0xc0] sm:$0xff]
        %v2196 = vld [vmem:[%s2170 + $0xc8] sm:$0xff]
        %v2197 = vld [vmem:[%s2170 + $0xd0] sm:$0xff]
        %v2198 = vld [vmem:[%s2170 + $0xd8] sm:$0xff]
        %v2199 = vrot.slane %v1944, 3
        %v2200 = vrot.slane %v1945, 3
        %v2202 = vsel %vm966, %v2200, 0
        %2204 = vmatpush.msra.mxu0 %v2186
        %2205 = vmatpush.msra.mxu0 %v2185
        %2206 = vmatpush.msra.mxu0 %v2184
        %2207 = vmatpush.msra.mxu0 %v2183
        %2208 = vmatpush.msra.mxu0 %v2182
        %2209 = vmatpush.msra.mxu0 %v2181
        %2210 = vmatpush.msra.mxu0 %v2180
        %2211 = vmatpush.msra.mxu0 %v2179
        %2212 = vmatpush.msra.mxu0 %v2178
        %2213 = vmatpush.msra.mxu0 %v2177
        %2214 = vmatpush.msra.mxu0 %v2176
        %2215 = vmatpush.msra.mxu0 %v2175
        %2216 = vmatpush.msra.mxu0 %v2174
        %2217 = vmatpush.msra.mxu0 %v2173
        %2218 = vmatpush.msra.mxu0 %v2172
        %2219 = vmatpush.msra.mxu0 %v2171
        %2220 = vmatmul.f32.gmra.mxu0 %v2199
        %v2221 = vpop.f32.mrf.mxu0
        %v2222 = vadd.f32 0.0, %v2221
        %2223 = vdwg.mxu0
        %2224 = vmatpush.msra.mxu0 0.0
        %2225 = vmatpush.msra.mxu0 0.0
        %2226 = vmatpush.msra.mxu0 0.0
        %2227 = vmatpush.msra.mxu0 0.0
        %2228 = vmatpush.msra.mxu0 %v2198
        %2229 = vmatpush.msra.mxu0 %v2197
        %2230 = vmatpush.msra.mxu0 %v2196
        %2231 = vmatpush.msra.mxu0 %v2195
        %2232 = vmatpush.msra.mxu0 %v2194
        %2233 = vmatpush.msra.mxu0 %v2193
        %2234 = vmatpush.msra.mxu0 %v2192
        %2235 = vmatpush.msra.mxu0 %v2191
        %2236 = vmatpush.msra.mxu0 %v2190
        %2237 = vmatpush.msra.mxu0 %v2189
        %2238 = vmatpush.msra.mxu0 %v2188
        %2239 = vmatpush.msra.mxu0 %v2187
        %2240 = vmatmul.f32.gmra.mxu0 %v2202
        %v2241 = vpop.f32.mrf.mxu0
        %v2242 = vadd.f32 %v2222, %v2241
        %2243 = vdwg.mxu0
        %v2244 = vadd.f32 %v2169, %v2242
        %s2245 = scalar_lea.vmem %s7, 896
        %v2246 = vld [vmem:[%s2245] sm:$0xff]
        %v2247 = vld [vmem:[%s2245 + $0x8] sm:$0xff]
        %v2248 = vld [vmem:[%s2245 + $0x10] sm:$0xff]
        %v2249 = vld [vmem:[%s2245 + $0x18] sm:$0xff]
        %v2250 = vld [vmem:[%s2245 + $0x20] sm:$0xff]
        %v2251 = vld [vmem:[%s2245 + $0x28] sm:$0xff]
        %v2252 = vld [vmem:[%s2245 + $0x30] sm:$0xff]
        %v2253 = vld [vmem:[%s2245 + $0x38] sm:$0xff]
        %v2254 = vld [vmem:[%s2245 + $0x40] sm:$0xff]
        %v2255 = vld [vmem:[%s2245 + $0x48] sm:$0xff]
        %v2256 = vld [vmem:[%s2245 + $0x50] sm:$0xff]
        %v2257 = vld [vmem:[%s2245 + $0x58] sm:$0xff]
        %v2258 = vld [vmem:[%s2245 + $0x60] sm:$0xff]
        %v2259 = vld [vmem:[%s2245 + $0x68] sm:$0xff]
        %v2260 = vld [vmem:[%s2245 + $0x70] sm:$0xff]
        %v2261 = vld [vmem:[%s2245 + $0x78] sm:$0xff]
        %v2262 = vld [vmem:[%s2245 + $0x80] sm:$0xff]
        %v2263 = vld [vmem:[%s2245 + $0x88] sm:$0xff]
        %v2264 = vld [vmem:[%s2245 + $0x90] sm:$0xff]
        %v2265 = vld [vmem:[%s2245 + $0x98] sm:$0xff]
        %v2266 = vld [vmem:[%s2245 + $0xa0] sm:$0xff]
        %v2267 = vld [vmem:[%s2245 + $0xa8] sm:$0xff]
        %v2268 = vld [vmem:[%s2245 + $0xb0] sm:$0xff]
        %v2269 = vld [vmem:[%s2245 + $0xb8] sm:$0xff]
        %v2270 = vld [vmem:[%s2245 + $0xc0] sm:$0xff]
        %v2271 = vld [vmem:[%s2245 + $0xc8] sm:$0xff]
        %v2272 = vld [vmem:[%s2245 + $0xd0] sm:$0xff]
        %v2273 = vld [vmem:[%s2245 + $0xd8] sm:$0xff]
        %v2274 = vrot.slane %v1944, 4
        %v2275 = vrot.slane %v1945, 4
        %v2277 = vsel %vm966, %v2275, 0
        %2279 = vmatpush.msra.mxu0 %v2261
        %2280 = vmatpush.msra.mxu0 %v2260
        %2281 = vmatpush.msra.mxu0 %v2259
        %2282 = vmatpush.msra.mxu0 %v2258
        %2283 = vmatpush.msra.mxu0 %v2257
        %2284 = vmatpush.msra.mxu0 %v2256
        %2285 = vmatpush.msra.mxu0 %v2255
        %2286 = vmatpush.msra.mxu0 %v2254
        %2287 = vmatpush.msra.mxu0 %v2253
        %2288 = vmatpush.msra.mxu0 %v2252
        %2289 = vmatpush.msra.mxu0 %v2251
        %2290 = vmatpush.msra.mxu0 %v2250
        %2291 = vmatpush.msra.mxu0 %v2249
        %2292 = vmatpush.msra.mxu0 %v2248
        %2293 = vmatpush.msra.mxu0 %v2247
        %2294 = vmatpush.msra.mxu0 %v2246
        %2295 = vmatmul.f32.gmra.mxu0 %v2274
        %v2296 = vpop.f32.mrf.mxu0
        %v2297 = vadd.f32 0.0, %v2296
        %2298 = vdwg.mxu0
        %2299 = vmatpush.msra.mxu0 0.0
        %2300 = vmatpush.msra.mxu0 0.0
        %2301 = vmatpush.msra.mxu0 0.0
        %2302 = vmatpush.msra.mxu0 0.0
        %2303 = vmatpush.msra.mxu0 %v2273
        %2304 = vmatpush.msra.mxu0 %v2272
        %2305 = vmatpush.msra.mxu0 %v2271
        %2306 = vmatpush.msra.mxu0 %v2270
        %2307 = vmatpush.msra.mxu0 %v2269
        %2308 = vmatpush.msra.mxu0 %v2268
        %2309 = vmatpush.msra.mxu0 %v2267
        %2310 = vmatpush.msra.mxu0 %v2266
        %2311 = vmatpush.msra.mxu0 %v2265
        %2312 = vmatpush.msra.mxu0 %v2264
        %2313 = vmatpush.msra.mxu0 %v2263
        %2314 = vmatpush.msra.mxu0 %v2262
        %2315 = vmatmul.f32.gmra.mxu0 %v2277
        %v2316 = vpop.f32.mrf.mxu0
        %v2317 = vadd.f32 %v2297, %v2316
        %2318 = vdwg.mxu0
        %v2319 = vadd.f32 %v2244, %v2317
        %s2320 = scalar_lea.vmem %s7, 1120
        %v2321 = vld [vmem:[%s2320] sm:$0xff]
        %v2322 = vld [vmem:[%s2320 + $0x8] sm:$0xff]
        %v2323 = vld [vmem:[%s2320 + $0x10] sm:$0xff]
        %v2324 = vld [vmem:[%s2320 + $0x18] sm:$0xff]
        %v2325 = vld [vmem:[%s2320 + $0x20] sm:$0xff]
        %v2326 = vld [vmem:[%s2320 + $0x28] sm:$0xff]
        %v2327 = vld [vmem:[%s2320 + $0x30] sm:$0xff]
        %v2328 = vld [vmem:[%s2320 + $0x38] sm:$0xff]
        %v2329 = vld [vmem:[%s2320 + $0x40] sm:$0xff]
        %v2330 = vld [vmem:[%s2320 + $0x48] sm:$0xff]
        %v2331 = vld [vmem:[%s2320 + $0x50] sm:$0xff]
        %v2332 = vld [vmem:[%s2320 + $0x58] sm:$0xff]
        %v2333 = vld [vmem:[%s2320 + $0x60] sm:$0xff]
        %v2334 = vld [vmem:[%s2320 + $0x68] sm:$0xff]
        %v2335 = vld [vmem:[%s2320 + $0x70] sm:$0xff]
        %v2336 = vld [vmem:[%s2320 + $0x78] sm:$0xff]
        %v2337 = vld [vmem:[%s2320 + $0x80] sm:$0xff]
        %v2338 = vld [vmem:[%s2320 + $0x88] sm:$0xff]
        %v2339 = vld [vmem:[%s2320 + $0x90] sm:$0xff]
        %v2340 = vld [vmem:[%s2320 + $0x98] sm:$0xff]
        %v2341 = vld [vmem:[%s2320 + $0xa0] sm:$0xff]
        %v2342 = vld [vmem:[%s2320 + $0xa8] sm:$0xff]
        %v2343 = vld [vmem:[%s2320 + $0xb0] sm:$0xff]
        %v2344 = vld [vmem:[%s2320 + $0xb8] sm:$0xff]
        %v2345 = vld [vmem:[%s2320 + $0xc0] sm:$0xff]
        %v2346 = vld [vmem:[%s2320 + $0xc8] sm:$0xff]
        %v2347 = vld [vmem:[%s2320 + $0xd0] sm:$0xff]
        %v2348 = vld [vmem:[%s2320 + $0xd8] sm:$0xff]
        %v2349 = vrot.slane %v1944, 5
        %v2350 = vrot.slane %v1945, 5
        %v2352 = vsel %vm966, %v2350, 0
        %2354 = vmatpush.msra.mxu0 %v2336
        %2355 = vmatpush.msra.mxu0 %v2335
        %2356 = vmatpush.msra.mxu0 %v2334
        %2357 = vmatpush.msra.mxu0 %v2333
        %2358 = vmatpush.msra.mxu0 %v2332
        %2359 = vmatpush.msra.mxu0 %v2331
        %2360 = vmatpush.msra.mxu0 %v2330
        %2361 = vmatpush.msra.mxu0 %v2329
        %2362 = vmatpush.msra.mxu0 %v2328
        %2363 = vmatpush.msra.mxu0 %v2327
        %2364 = vmatpush.msra.mxu0 %v2326
        %2365 = vmatpush.msra.mxu0 %v2325
        %2366 = vmatpush.msra.mxu0 %v2324
        %2367 = vmatpush.msra.mxu0 %v2323
        %2368 = vmatpush.msra.mxu0 %v2322
        %2369 = vmatpush.msra.mxu0 %v2321
        %2370 = vmatmul.f32.gmra.mxu0 %v2349
        %v2371 = vpop.f32.mrf.mxu0
        %v2372 = vadd.f32 0.0, %v2371
        %2373 = vdwg.mxu0
        %2374 = vmatpush.msra.mxu0 0.0
        %2375 = vmatpush.msra.mxu0 0.0
        %2376 = vmatpush.msra.mxu0 0.0
        %2377 = vmatpush.msra.mxu0 0.0
        %2378 = vmatpush.msra.mxu0 %v2348
        %2379 = vmatpush.msra.mxu0 %v2347
        %2380 = vmatpush.msra.mxu0 %v2346
        %2381 = vmatpush.msra.mxu0 %v2345
        %2382 = vmatpush.msra.mxu0 %v2344
        %2383 = vmatpush.msra.mxu0 %v2343
        %2384 = vmatpush.msra.mxu0 %v2342
        %2385 = vmatpush.msra.mxu0 %v2341
        %2386 = vmatpush.msra.mxu0 %v2340
        %2387 = vmatpush.msra.mxu0 %v2339
        %2388 = vmatpush.msra.mxu0 %v2338
        %2389 = vmatpush.msra.mxu0 %v2337
        %2390 = vmatmul.f32.gmra.mxu0 %v2352
        %v2391 = vpop.f32.mrf.mxu0
        %v2392 = vadd.f32 %v2372, %v2391
        %2393 = vdwg.mxu0
        %v2394 = vadd.f32 %v2319, %v2392
        %s2395 = scalar_lea.vmem %s7, 1344
        %v2396 = vld [vmem:[%s2395] sm:$0xff]
        %v2397 = vld [vmem:[%s2395 + $0x8] sm:$0xff]
        %v2398 = vld [vmem:[%s2395 + $0x10] sm:$0xff]
        %v2399 = vld [vmem:[%s2395 + $0x18] sm:$0xff]
        %v2400 = vld [vmem:[%s2395 + $0x20] sm:$0xff]
        %v2401 = vld [vmem:[%s2395 + $0x28] sm:$0xff]
        %v2402 = vld [vmem:[%s2395 + $0x30] sm:$0xff]
        %v2403 = vld [vmem:[%s2395 + $0x38] sm:$0xff]
        %v2404 = vld [vmem:[%s2395 + $0x40] sm:$0xff]
        %v2405 = vld [vmem:[%s2395 + $0x48] sm:$0xff]
        %v2406 = vld [vmem:[%s2395 + $0x50] sm:$0xff]
        %v2407 = vld [vmem:[%s2395 + $0x58] sm:$0xff]
        %v2408 = vld [vmem:[%s2395 + $0x60] sm:$0xff]
        %v2409 = vld [vmem:[%s2395 + $0x68] sm:$0xff]
        %v2410 = vld [vmem:[%s2395 + $0x70] sm:$0xff]
        %v2411 = vld [vmem:[%s2395 + $0x78] sm:$0xff]
        %v2412 = vld [vmem:[%s2395 + $0x80] sm:$0xff]
        %v2413 = vld [vmem:[%s2395 + $0x88] sm:$0xff]
        %v2414 = vld [vmem:[%s2395 + $0x90] sm:$0xff]
        %v2415 = vld [vmem:[%s2395 + $0x98] sm:$0xff]
        %v2416 = vld [vmem:[%s2395 + $0xa0] sm:$0xff]
        %v2417 = vld [vmem:[%s2395 + $0xa8] sm:$0xff]
        %v2418 = vld [vmem:[%s2395 + $0xb0] sm:$0xff]
        %v2419 = vld [vmem:[%s2395 + $0xb8] sm:$0xff]
        %v2420 = vld [vmem:[%s2395 + $0xc0] sm:$0xff]
        %v2421 = vld [vmem:[%s2395 + $0xc8] sm:$0xff]
        %v2422 = vld [vmem:[%s2395 + $0xd0] sm:$0xff]
        %v2423 = vld [vmem:[%s2395 + $0xd8] sm:$0xff]
        %v2424 = vrot.slane %v1944, 6
        %v2425 = vrot.slane %v1945, 6
        %v2427 = vsel %vm966, %v2425, 0
        %2429 = vmatpush.msra.mxu0 %v2411
        %2430 = vmatpush.msra.mxu0 %v2410
        %2431 = vmatpush.msra.mxu0 %v2409
        %2432 = vmatpush.msra.mxu0 %v2408
        %2433 = vmatpush.msra.mxu0 %v2407
        %2434 = vmatpush.msra.mxu0 %v2406
        %2435 = vmatpush.msra.mxu0 %v2405
        %2436 = vmatpush.msra.mxu0 %v2404
        %2437 = vmatpush.msra.mxu0 %v2403
        %2438 = vmatpush.msra.mxu0 %v2402
        %2439 = vmatpush.msra.mxu0 %v2401
        %2440 = vmatpush.msra.mxu0 %v2400
        %2441 = vmatpush.msra.mxu0 %v2399
        %2442 = vmatpush.msra.mxu0 %v2398
        %2443 = vmatpush.msra.mxu0 %v2397
        %2444 = vmatpush.msra.mxu0 %v2396
        %2445 = vmatmul.f32.gmra.mxu0 %v2424
        %v2446 = vpop.f32.mrf.mxu0
        %v2447 = vadd.f32 0.0, %v2446
        %2448 = vdwg.mxu0
        %2449 = vmatpush.msra.mxu0 0.0
        %2450 = vmatpush.msra.mxu0 0.0
        %2451 = vmatpush.msra.mxu0 0.0
        %2452 = vmatpush.msra.mxu0 0.0
        %2453 = vmatpush.msra.mxu0 %v2423
        %2454 = vmatpush.msra.mxu0 %v2422
        %2455 = vmatpush.msra.mxu0 %v2421
        %2456 = vmatpush.msra.mxu0 %v2420
        %2457 = vmatpush.msra.mxu0 %v2419
        %2458 = vmatpush.msra.mxu0 %v2418
        %2459 = vmatpush.msra.mxu0 %v2417
        %2460 = vmatpush.msra.mxu0 %v2416
        %2461 = vmatpush.msra.mxu0 %v2415
        %2462 = vmatpush.msra.mxu0 %v2414
        %2463 = vmatpush.msra.mxu0 %v2413
        %2464 = vmatpush.msra.mxu0 %v2412
        %2465 = vmatmul.f32.gmra.mxu0 %v2427
        %v2466 = vpop.f32.mrf.mxu0
        %v2467 = vadd.f32 %v2447, %v2466
        %2468 = vdwg.mxu0
        %v2469 = vadd.f32 %v2394, %v2467
        %vm2470 = vcmask 73728
        %2471 = vst.msk [vmem:[%s324] sm:$0x1] %vm2470, %v2469
        %s2472 = sand.u32 %s225, 1
        %s2473 = scalar_lea.sflag [#allocation3], %s2472
        %s2474 = sand.u32 %s225, 1
        %s2475 = scalar_lea.vmem [#allocation2], %s2474
        // Predicated region
        $region57: #{simple_model_forward.1} parent=55 // pred_check
          %p2476 = pneg %p235
        $region58: #{simple_model_forward.1} parent=55 // pred_check_branch
          %2478 = sbr.rel (%p2476) target = $region60
        $region59: #{simple_model_forward.1} parent=55 // pred_region
          %2480 = vsyncadd %s2473, 0
          %s2481 = scalar_lea.hbm %s9, %s23
          %s2483 = sshll.u32 %s2475, 4
          %s2484 = int_to_ptr.vmem [resolvable:$true] %s2483
          %s2485 = sshll.u32 %s2481, 4
          %s2486 = int_to_ptr.hbm [resolvable:$true] %s2485
          %2488 = dma.vmem_to_hbm [thread:$0]  %s2484, 16, %s2486, %s2473
        $region60: #{simple_model_forward.1} parent=55 // pred_fallthru
          _
      $region56: #{simple_model_forward.1} parent=5 // pred_fallthru
        _
      %p2489 = scmp.le.s32.totalorder 2, %s18
      // Predicated region
      $region61: #{simple_model_forward.1} parent=5 // pred_check
        %p2490 = pneg %p2489
      $region62: #{simple_model_forward.1} parent=5 // pred_check_branch
        %2492 = sbr.rel (%p2490) target = $region64
      $region63: #{simple_model_forward.1} parent=5 // pred_region
        %s2493 = ssub.s32 %s18, 2
        // Predicated region
        $region65: #{simple_model_forward.1} parent=63 // pred_check
          %p2494 = pneg %p241
        $region66: #{simple_model_forward.1} parent=63 // pred_check_branch
          %2496 = sbr.rel (%p2494) target = $region68
        $region67: #{simple_model_forward.1} parent=63 // pred_region
          %s2497 = sand.u32 %s226, 1
          %s2498 = scalar_lea.sflag [#allocation3], %s2497
          %s2499 = sand.u32 %s226, 1
          %s2500 = scalar_lea.vmem [#allocation2], %s2499
          %2502 = dma.done %s2498, 16
        $region68: #{simple_model_forward.1} parent=63 // pred_fallthru
          _
      $region64: #{simple_model_forward.1} parent=5 // pred_fallthru
        _
    $region6: #{simple_model_forward.1} parent=1 // loop_footer
      %s22 = sadd.s32 1, %s18
    $region7: #{simple_model_forward.1} parent=1 // loop_footer_branch
      %17 = sbr.rel target = $region3
    $region8: #{simple_model_forward.1} parent=1 // loop_exit
      _
    %2503 = vsyncpa [#allocation3], 1
    %s2504 = scalar_lea.sflag [#allocation3], 1
    %2505 = vsyncpa %s2504, 1

</llo_original>
